<compile_context>
chip_gen: v7x
topology: tpu7x:2x2x1
jax: 0.10.0
libtpu: 0.0.40
codegen_flags: <defaults>
</compile_context>

<pallas_src>
import functools

import jax
import jax.numpy as jnp
from jax.experimental import pallas as pl
from jax.experimental.pallas import tpu as pltpu


# ------------------------------- Pallas kernel ------------------------------ #

def _bottleneck_kernel(x_ref, w1_ref, b1_ref, w2_ref, b2_ref, w3_ref, b3_ref,
                       ml_ref, mr_ref, o_ref, h1_ref, *, hw, w, pad0):
    """Full Bottleneck block for one image (flattened (H*W, C) layout)."""
    x = x_ref[0]                                               # (HW, Cpad) bf16

    # ---- conv1 (1x1) + bn1 + relu  (BN scale folded into w1) -------------- #
    y1 = jnp.dot(x, w1_ref[...], preferred_element_type=jnp.float32)
    y1 = jnp.maximum(y1 + b1_ref[...], 0.0)                    # (HW, Ppad) f32

    # Stage into a zero-halo scratch: vertical 3x3 taps become static row
    # offsets of the flattened slab (out-of-image rows read the zero halo).
    h1_ref[...] = jnp.zeros_like(h1_ref)
    h1_ref[pad0:pad0 + hw, :] = y1

    # ---- conv2 (3x3, pad=1, stride=1) + bn2 + relu ------------------------ #
    acc = b2_ref[...]                                          # (1, Ppad) f32, broadcasts
    for dy in (-1, 0, 1):
        for dx in (-1, 0, 1):
            k = (dy + 1) * 3 + (dx + 1)                        # tap index (kh*3+kw)
            start = pad0 + dy * w + dx                         # static offset
            patch = h1_ref[start:start + hw, :]                # (HW, Ppad) f32
            if dx == -1:
                patch = patch * ml_ref[...]                    # kill w == 0 rows
            elif dx == 1:
                patch = patch * mr_ref[...]                    # kill w == W-1 rows
            acc = acc + jnp.dot(patch.astype(jnp.bfloat16), w2_ref[k],
                                preferred_element_type=jnp.float32)
    y2 = jnp.maximum(acc, 0.0).astype(jnp.bfloat16)            # (HW, Ppad)

    # ---- conv3 (1x1) + bn3 + identity residual + relu --------------------- #
    y3 = jnp.dot(y2, w3_ref[...], preferred_element_type=jnp.float32)
    y3 = y3 + b3_ref[...] + x.astype(jnp.float32)              # downsample=None
    o_ref[0] = jnp.maximum(y3, 0.0).astype(o_ref.dtype)


# ------------------------------ Pallas wrapper ------------------------------ #

def _bn_fold(gamma, beta, mean, var, eps=1e-5):
    scale = gamma / jnp.sqrt(var + eps)
    return scale, beta - mean * scale


def _round_up(x, m):
    return (x + m - 1) // m * m


def _pad_to(a, axis, size):
    amt = size - a.shape[axis]
    if amt == 0:
        return a
    widths = [(0, 0)] * a.ndim
    widths[axis] = (0, amt)
    return jnp.pad(a, widths)


def bottleneck_forward(x_nchw, params, stride=1):
    """Pallas implementation of Bottleneck.forward (downsample=None)."""
    assert stride == 1, "identity residual (downsample=None) requires stride=1"
    n, cin, h, w = x_nchw.shape
    planes = params["w1"].shape[0]
    cout = params["w3"].shape[0]                       # planes * 4
    assert cout == cin, "downsample=None requires inplanes == planes * 4"
    hw = h * w

    lanes = 128
    cpad = _round_up(cin, lanes)
    ppad = _round_up(planes, lanes)
    pad0 = _round_up(w + 1, 8)                         # aligned halo rows

    s1, b1 = _bn_fold(params["bn1_gamma"], params["bn1_beta"],
                      params["bn1_mean"], params["bn1_var"])
    s2, b2 = _bn_fold(params["bn2_gamma"], params["bn2_beta"],
                      params["bn2_mean"], params["bn2_var"])
    s3, b3 = _bn_fold(params["bn3_gamma"], params["bn3_beta"],
                      params["bn3_mean"], params["bn3_var"])

    # activations: NCHW -> (N, H*W, Cpad), bf16 for the MXU
    x = jnp.transpose(x_nchw, (0, 2, 3, 1)).reshape(n, hw, cin)
    x = _pad_to(x, 2, cpad).astype(jnp.bfloat16)

    # weights: BN scale folded in, channel-padded, bf16
    w1 = params["w1"][:, :, 0, 0].T * s1[None, :]                     # (cin, p)
    w1 = _pad_to(_pad_to(w1, 0, cpad), 1, ppad).astype(jnp.bfloat16)
    w2 = (jnp.transpose(params["w2"], (2, 3, 1, 0)) * s2)             # (3,3,i,o)
    w2 = w2.reshape(9, planes, planes)
    w2 = _pad_to(_pad_to(w2, 1, ppad), 2, ppad).astype(jnp.bfloat16)
    w3 = params["w3"][:, :, 0, 0].T * s3[None, :]                     # (p, cout)
    w3 = _pad_to(_pad_to(w3, 0, ppad), 1, cpad).astype(jnp.bfloat16)

    b1p = _pad_to(b1, 0, ppad).reshape(1, ppad).astype(jnp.float32)
    b2p = _pad_to(b2, 0, ppad).reshape(1, ppad).astype(jnp.float32)
    b3p = _pad_to(b3, 0, cpad).reshape(1, cpad).astype(jnp.float32)

    # horizontal-border masks for the dx = -1 / +1 taps of the 3x3 conv
    col = jnp.arange(hw, dtype=jnp.int32) % w
    ml = (col != 0).astype(jnp.float32).reshape(hw, 1)
    mr = (col != w - 1).astype(jnp.float32).reshape(hw, 1)

    kernel = functools.partial(_bottleneck_kernel, hw=hw, w=w, pad0=pad0)

    out = pl.pallas_call(
        kernel,
        out_shape=jax.ShapeDtypeStruct((n, hw, cpad), jnp.float32),
        grid=(n,),
        in_specs=[
            pl.BlockSpec((1, hw, cpad), lambda i: (i, 0, 0)),    # x (also residual)
            pl.BlockSpec((cpad, ppad), lambda i: (0, 0)),        # w1 (scale folded)
            pl.BlockSpec((1, ppad), lambda i: (0, 0)),           # bn1 bias
            pl.BlockSpec((9, ppad, ppad), lambda i: (0, 0, 0)),  # w2 (scale folded)
            pl.BlockSpec((1, ppad), lambda i: (0, 0)),           # bn2 bias
            pl.BlockSpec((ppad, cpad), lambda i: (0, 0)),        # w3 (scale folded)
            pl.BlockSpec((1, cpad), lambda i: (0, 0)),           # bn3 bias
            pl.BlockSpec((hw, 1), lambda i: (0, 0)),             # left-border mask
            pl.BlockSpec((hw, 1), lambda i: (0, 0)),             # right-border mask
        ],
        out_specs=pl.BlockSpec((1, hw, cpad), lambda i: (i, 0, 0)),
        scratch_shapes=[pltpu.VMEM((hw + 2 * pad0, ppad), jnp.float32)],
        compiler_params=pltpu.CompilerParams(
            dimension_semantics=("parallel",)),
    )(x, w1, b1p, w2, b2p, w3, b3p, ml, mr)

    out = out[:, :, :cout].reshape(n, h, w, cout)
    return jnp.transpose(out, (0, 3, 1, 2))                      # NHWC -> NCHW


# ------------------------------ pure-JAX reference -------------------------- #

def reference_forward(x_nchw, params, stride=1, eps=1e-5):
    def conv(x, w, s, pad):
        return jax.lax.conv_general_dilated(
            x, w, window_strides=(s, s), padding=[(pad, pad), (pad, pad)],
            dimension_numbers=("NCHW", "OIHW", "NCHW"))

    def bn(x, g, b, m, v):
        g, b, m, v = (t[None, :, None, None] for t in (g, b, m, v))
        return (x - m) / jnp.sqrt(v + eps) * g + b

    out = jax.nn.relu(bn(conv(x_nchw, params["w1"], 1, 0),
                         params["bn1_gamma"], params["bn1_beta"],
                         params["bn1_mean"], params["bn1_var"]))
    out = jax.nn.relu(bn(conv(out, params["w2"], stride, 1),
                         params["bn2_gamma"], params["bn2_beta"],
                         params["bn2_mean"], params["bn2_var"]))
    out = bn(conv(out, params["w3"], 1, 0),
             params["bn3_gamma"], params["bn3_beta"],
             params["bn3_mean"], params["bn3_var"])
    return jax.nn.relu(out + x_nchw)


# ----------------------------------- main ----------------------------------- #

def make_params(key, inplanes, planes):
    ks = jax.random.split(key, 16)
    exp = 4

    def bn_params(k0, k1, k2, k3, c):
        return dict(
            gamma=jax.random.uniform(k0, (c,), jnp.float32, 0.5, 1.5),
            beta=0.1 * jax.random.normal(k1, (c,), jnp.float32),
            mean=0.1 * jax.random.normal(k2, (c,), jnp.float32),
            var=jax.random.uniform(k3, (c,), jnp.float32, 0.5, 1.5),
        )

    bn1 = bn_params(ks[3], ks[4], ks[5], ks[6], planes)
    bn2 = bn_params(ks[7], ks[8], ks[9], ks[10], planes)
    bn3 = bn_params(ks[11], ks[12], ks[13], ks[14], planes * exp)

    return {
        "w1": 0.1 * jax.random.normal(ks[0], (planes, inplanes, 1, 1), jnp.float32),
        "w2": 0.1 * jax.random.normal(ks[1], (planes, planes, 3, 3), jnp.float32),
        "w3": 0.1 * jax.random.normal(ks[2], (planes * exp, planes, 1, 1), jnp.float32),
        "bn1_gamma": bn1["gamma"], "bn1_beta": bn1["beta"],
        "bn1_mean": bn1["mean"], "bn1_var": bn1["var"],
        "bn2_gamma": bn2["gamma"], "bn2_beta": bn2["beta"],
        "bn2_mean": bn2["mean"], "bn2_var": bn2["var"],
        "bn3_gamma": bn3["gamma"], "bn3_beta": bn3["beta"],
        "bn3_mean": bn3["mean"], "bn3_var": bn3["var"],
    }


if __name__ == "__main__":
    key = jax.random.PRNGKey(0)
    k_x, k_p = jax.random.split(key)

    # downsample=None => stride must be 1 and inplanes == planes * expansion
    batch, inplanes, planes, spatial = 2, 16, 4, 8
    x = jax.random.normal(k_x, (batch, inplanes, spatial, spatial), jnp.float32)
    params = make_params(k_p, inplanes, planes)

    out = bottleneck_forward(x, params, stride=1)
    out = jax.block_until_ready(out)

    ref = jax.block_until_ready(reference_forward(x, params, stride=1))
    assert out.shape == (batch, planes * 4, spatial, spatial), out.shape
    # bf16 matmul inputs (f32 accumulation) => looser tolerance vs f32 reference
    assert jnp.allclose(out, ref, rtol=5e-2, atol=5e-2), \
        float(jnp.max(jnp.abs(out - ref)))

    print("KERNEL_OK")
</pallas_src>

<mosaic_0001>
module attributes {stable_mosaic.version = 11 : i64} {
  func.func @_bottleneck_kernel(%arg0: i32, %arg1: memref<1x64x128xbf16, #tpu.memory_space<vmem>>, %arg2: memref<128x128xbf16, #tpu.memory_space<vmem>>, %arg3: memref<1x128xf32, #tpu.memory_space<vmem>>, %arg4: memref<9x128x128xbf16, #tpu.memory_space<vmem>>, %arg5: memref<1x128xf32, #tpu.memory_space<vmem>>, %arg6: memref<128x128xbf16, #tpu.memory_space<vmem>>, %arg7: memref<1x128xf32, #tpu.memory_space<vmem>>, %arg8: memref<64x1xf32, #tpu.memory_space<vmem>>, %arg9: memref<64x1xf32, #tpu.memory_space<vmem>>, %arg10: memref<1x64x128xf32, #tpu.memory_space<vmem>>, %arg11: memref<96x128xf32, #tpu.memory_space<vmem>>) attributes {dimension_semantics = [#tpu.dimension_semantics<parallel>], iteration_bounds = array<i64: 2>, scalar_prefetch = 0 : i64, scratch_operands = 1 : i64, tpu.core_type = #tpu.core_type<tc>, window_params = [{transform_indices = @transform_0, window_bounds = array<i64: 1, 64, 128>}, {pipeline_mode = #tpu.pipeline_mode<synchronous>, transform_indices = @transform_1, window_bounds = array<i64: 128, 128>}, {pipeline_mode = #tpu.pipeline_mode<synchronous>, transform_indices = @transform_2, window_bounds = array<i64: 1, 128>}, {pipeline_mode = #tpu.pipeline_mode<synchronous>, transform_indices = @transform_3, window_bounds = array<i64: 9, 128, 128>}, {pipeline_mode = #tpu.pipeline_mode<synchronous>, transform_indices = @transform_4, window_bounds = array<i64: 1, 128>}, {pipeline_mode = #tpu.pipeline_mode<synchronous>, transform_indices = @transform_5, window_bounds = array<i64: 128, 128>}, {pipeline_mode = #tpu.pipeline_mode<synchronous>, transform_indices = @transform_6, window_bounds = array<i64: 1, 128>}, {pipeline_mode = #tpu.pipeline_mode<synchronous>, transform_indices = @transform_7, window_bounds = array<i64: 64, 1>}, {pipeline_mode = #tpu.pipeline_mode<synchronous>, transform_indices = @transform_8, window_bounds = array<i64: 64, 1>}, {transform_indices = @transform_9, window_bounds = array<i64: 1, 64, 128>}]} {
    %c0 = arith.constant 0 : index
    %c0_0 = arith.constant 0 : index
    %c0_1 = arith.constant 0 : index
    %0 = vector.load %arg1[%c0, %c0_0, %c0_1] : memref<1x64x128xbf16, #tpu.memory_space<vmem>>, vector<1x64x128xbf16>
    %1 = vector.shape_cast %0 : vector<1x64x128xbf16> to vector<64x128xbf16>
    %c0_2 = arith.constant 0 : index
    %c0_3 = arith.constant 0 : index
    %2 = vector.load %arg2[%c0_2, %c0_3] : memref<128x128xbf16, #tpu.memory_space<vmem>>, vector<128x128xbf16>
    %cst = arith.constant dense<0.000000e+00> : vector<64x128xf32>
    %3 = tpu.matmul %1, %2, %cst {dimension_numbers = #tpu.dot_dimension_numbers<[1], [0], [0], [1], [0, 0, 1, 1], [], []>} : vector<64x128xbf16>, vector<128x128xbf16>, vector<64x128xf32> -> vector<64x128xf32>
    %c0_4 = arith.constant 0 : index
    %c0_5 = arith.constant 0 : index
    %4 = vector.load %arg3[%c0_4, %c0_5] : memref<1x128xf32, #tpu.memory_space<vmem>>, vector<1x128xf32>
    %5 = vector.broadcast %4 : vector<1x128xf32> to vector<64x128xf32>
    %6 = arith.addf %3, %5 : vector<64x128xf32>
    %cst_6 = arith.constant 0.000000e+00 : f32
    %7 = vector.broadcast %cst_6 : f32 to vector<64x128xf32>
    %8 = arith.maximumf %6, %7 : vector<64x128xf32>
    %cst_7 = arith.constant 0.000000e+00 : f32
    %9 = vector.broadcast %cst_7 : f32 to vector<96x128xf32>
    %c0_8 = arith.constant 0 : index
    %c0_9 = arith.constant 0 : index
    %10 = vector.load %arg11[%c0_8, %c0_9] : memref<96x128xf32, #tpu.memory_space<vmem>>, vector<96x128xf32>
    tpu.vector_store %arg11[%c0_8, %c0_9], %9 {strides = array<i32>} : memref<96x128xf32, #tpu.memory_space<vmem>>, vector<96x128xf32>,
    %c16 = arith.constant 16 : index
    %c0_10 = arith.constant 0 : index
    %11 = vector.load %arg11[%c16, %c0_10] : memref<96x128xf32, #tpu.memory_space<vmem>>, vector<64x128xf32>
    tpu.vector_store %arg11[%c16, %c0_10], %8 {strides = array<i32>} : memref<96x128xf32, #tpu.memory_space<vmem>>, vector<64x128xf32>,
    %c0_11 = arith.constant 0 : index
    %c0_12 = arith.constant 0 : index
    %12 = vector.load %arg5[%c0_11, %c0_12] : memref<1x128xf32, #tpu.memory_space<vmem>>, vector<1x128xf32>
    %c7 = arith.constant 7 : index
    %c0_13 = arith.constant 0 : index
    %13 = vector.load %arg11[%c7, %c0_13] : memref<96x128xf32, #tpu.memory_space<vmem>>, vector<64x128xf32>
    %c0_14 = arith.constant 0 : index
    %c0_15 = arith.constant 0 : index
    %14 = vector.load %arg8[%c0_14, %c0_15] : memref<64x1xf32, #tpu.memory_space<vmem>>, vector<64x1xf32>
    %15 = vector.broadcast %14 : vector<64x1xf32> to vector<64x128xf32>
    %16 = arith.mulf %13, %15 : vector<64x128xf32>
    %17 = arith.truncf %16 : vector<64x128xf32> to vector<64x128xbf16>
    %c0_16 = arith.constant 0 : index
    %c0_17 = arith.constant 0 : index
    %c0_18 = arith.constant 0 : index
    %18 = vector.load %arg4[%c0_16, %c0_17, %c0_18] : memref<9x128x128xbf16, #tpu.memory_space<vmem>>, vector<1x128x128xbf16>
    %19 = vector.shape_cast %18 : vector<1x128x128xbf16> to vector<128x128xbf16>
    %cst_19 = arith.constant dense<0.000000e+00> : vector<64x128xf32>
    %20 = tpu.matmul %17, %19, %cst_19 {dimension_numbers = #tpu.dot_dimension_numbers<[1], [0], [0], [1], [0, 0, 1, 1], [], []>} : vector<64x128xbf16>, vector<128x128xbf16>, vector<64x128xf32> -> vector<64x128xf32>
    %21 = vector.broadcast %12 : vector<1x128xf32> to vector<64x128xf32>
    %22 = arith.addf %21, %20 : vector<64x128xf32>
    %c8 = arith.constant 8 : index
    %c0_20 = arith.constant 0 : index
    %23 = vector.load %arg11[%c8, %c0_20] : memref<96x128xf32, #tpu.memory_space<vmem>>, vector<64x128xf32>
    %24 = arith.truncf %23 : vector<64x128xf32> to vector<64x128xbf16>
    %c1 = arith.constant 1 : index
    %c0_21 = arith.constant 0 : index
    %c0_22 = arith.constant 0 : index
    %25 = vector.load %arg4[%c1, %c0_21, %c0_22] : memref<9x128x128xbf16, #tpu.memory_space<vmem>>, vector<1x128x128xbf16>
    %26 = vector.shape_cast %25 : vector<1x128x128xbf16> to vector<128x128xbf16>
    %cst_23 = arith.constant dense<0.000000e+00> : vector<64x128xf32>
    %27 = tpu.matmul %24, %26, %cst_23 {dimension_numbers = #tpu.dot_dimension_numbers<[1], [0], [0], [1], [0, 0, 1, 1], [], []>} : vector<64x128xbf16>, vector<128x128xbf16>, vector<64x128xf32> -> vector<64x128xf32>
    %28 = arith.addf %22, %27 : vector<64x128xf32>
    %c9 = arith.constant 9 : index
    %c0_24 = arith.constant 0 : index
    %29 = vector.load %arg11[%c9, %c0_24] : memref<96x128xf32, #tpu.memory_space<vmem>>, vector<64x128xf32>
    %c0_25 = arith.constant 0 : index
    %c0_26 = arith.constant 0 : index
    %30 = vector.load %arg9[%c0_25, %c0_26] : memref<64x1xf32, #tpu.memory_space<vmem>>, vector<64x1xf32>
    %31 = vector.broadcast %30 : vector<64x1xf32> to vector<64x128xf32>
    %32 = arith.mulf %29, %31 : vector<64x128xf32>
    %33 = arith.truncf %32 : vector<64x128xf32> to vector<64x128xbf16>
    %c2 = arith.constant 2 : index
    %c0_27 = arith.constant 0 : index
    %c0_28 = arith.constant 0 : index
    %34 = vector.load %arg4[%c2, %c0_27, %c0_28] : memref<9x128x128xbf16, #tpu.memory_space<vmem>>, vector<1x128x128xbf16>
    %35 = vector.shape_cast %34 : vector<1x128x128xbf16> to vector<128x128xbf16>
    %cst_29 = arith.constant dense<0.000000e+00> : vector<64x128xf32>
    %36 = tpu.matmul %33, %35, %cst_29 {dimension_numbers = #tpu.dot_dimension_numbers<[1], [0], [0], [1], [0, 0, 1, 1], [], []>} : vector<64x128xbf16>, vector<128x128xbf16>, vector<64x128xf32> -> vector<64x128xf32>
    %37 = arith.addf %28, %36 : vector<64x128xf32>
    %c15 = arith.constant 15 : index
    %c0_30 = arith.constant 0 : index
    %38 = vector.load %arg11[%c15, %c0_30] : memref<96x128xf32, #tpu.memory_space<vmem>>, vector<64x128xf32>
    %c0_31 = arith.constant 0 : index
    %c0_32 = arith.constant 0 : index
    %39 = vector.load %arg8[%c0_31, %c0_32] : memref<64x1xf32, #tpu.memory_space<vmem>>, vector<64x1xf32>
    %40 = vector.broadcast %39 : vector<64x1xf32> to vector<64x128xf32>
    %41 = arith.mulf %38, %40 : vector<64x128xf32>
    %42 = arith.truncf %41 : vector<64x128xf32> to vector<64x128xbf16>
    %c3 = arith.constant 3 : index
    %c0_33 = arith.constant 0 : index
    %c0_34 = arith.constant 0 : index
    %43 = vector.load %arg4[%c3, %c0_33, %c0_34] : memref<9x128x128xbf16, #tpu.memory_space<vmem>>, vector<1x128x128xbf16>
    %44 = vector.shape_cast %43 : vector<1x128x128xbf16> to vector<128x128xbf16>
    %cst_35 = arith.constant dense<0.000000e+00> : vector<64x128xf32>
    %45 = tpu.matmul %42, %44, %cst_35 {dimension_numbers = #tpu.dot_dimension_numbers<[1], [0], [0], [1], [0, 0, 1, 1], [], []>} : vector<64x128xbf16>, vector<128x128xbf16>, vector<64x128xf32> -> vector<64x128xf32>
    %46 = arith.addf %37, %45 : vector<64x128xf32>
    %c16_36 = arith.constant 16 : index
    %c0_37 = arith.constant 0 : index
    %47 = vector.load %arg11[%c16_36, %c0_37] : memref<96x128xf32, #tpu.memory_space<vmem>>, vector<64x128xf32>
    %48 = arith.truncf %47 : vector<64x128xf32> to vector<64x128xbf16>
    %c4 = arith.constant 4 : index
    %c0_38 = arith.constant 0 : index
    %c0_39 = arith.constant 0 : index
    %49 = vector.load %arg4[%c4, %c0_38, %c0_39] : memref<9x128x128xbf16, #tpu.memory_space<vmem>>, vector<1x128x128xbf16>
    %50 = vector.shape_cast %49 : vector<1x128x128xbf16> to vector<128x128xbf16>
    %cst_40 = arith.constant dense<0.000000e+00> : vector<64x128xf32>
    %51 = tpu.matmul %48, %50, %cst_40 {dimension_numbers = #tpu.dot_dimension_numbers<[1], [0], [0], [1], [0, 0, 1, 1], [], []>} : vector<64x128xbf16>, vector<128x128xbf16>, vector<64x128xf32> -> vector<64x128xf32>
    %52 = arith.addf %46, %51 : vector<64x128xf32>
    %c17 = arith.constant 17 : index
    %c0_41 = arith.constant 0 : index
    %53 = vector.load %arg11[%c17, %c0_41] : memref<96x128xf32, #tpu.memory_space<vmem>>, vector<64x128xf32>
    %c0_42 = arith.constant 0 : index
    %c0_43 = arith.constant 0 : index
    %54 = vector.load %arg9[%c0_42, %c0_43] : memref<64x1xf32, #tpu.memory_space<vmem>>, vector<64x1xf32>
    %55 = vector.broadcast %54 : vector<64x1xf32> to vector<64x128xf32>
    %56 = arith.mulf %53, %55 : vector<64x128xf32>
    %57 = arith.truncf %56 : vector<64x128xf32> to vector<64x128xbf16>
    %c5 = arith.constant 5 : index
    %c0_44 = arith.constant 0 : index
    %c0_45 = arith.constant 0 : index
    %58 = vector.load %arg4[%c5, %c0_44, %c0_45] : memref<9x128x128xbf16, #tpu.memory_space<vmem>>, vector<1x128x128xbf16>
    %59 = vector.shape_cast %58 : vector<1x128x128xbf16> to vector<128x128xbf16>
    %cst_46 = arith.constant dense<0.000000e+00> : vector<64x128xf32>
    %60 = tpu.matmul %57, %59, %cst_46 {dimension_numbers = #tpu.dot_dimension_numbers<[1], [0], [0], [1], [0, 0, 1, 1], [], []>} : vector<64x128xbf16>, vector<128x128xbf16>, vector<64x128xf32> -> vector<64x128xf32>
    %61 = arith.addf %52, %60 : vector<64x128xf32>
    %c23 = arith.constant 23 : index
    %c0_47 = arith.constant 0 : index
    %62 = vector.load %arg11[%c23, %c0_47] : memref<96x128xf32, #tpu.memory_space<vmem>>, vector<64x128xf32>
    %c0_48 = arith.constant 0 : index
    %c0_49 = arith.constant 0 : index
    %63 = vector.load %arg8[%c0_48, %c0_49] : memref<64x1xf32, #tpu.memory_space<vmem>>, vector<64x1xf32>
    %64 = vector.broadcast %63 : vector<64x1xf32> to vector<64x128xf32>
    %65 = arith.mulf %62, %64 : vector<64x128xf32>
    %66 = arith.truncf %65 : vector<64x128xf32> to vector<64x128xbf16>
    %c6 = arith.constant 6 : index
    %c0_50 = arith.constant 0 : index
    %c0_51 = arith.constant 0 : index
    %67 = vector.load %arg4[%c6, %c0_50, %c0_51] : memref<9x128x128xbf16, #tpu.memory_space<vmem>>, vector<1x128x128xbf16>
    %68 = vector.shape_cast %67 : vector<1x128x128xbf16> to vector<128x128xbf16>
    %cst_52 = arith.constant dense<0.000000e+00> : vector<64x128xf32>
    %69 = tpu.matmul %66, %68, %cst_52 {dimension_numbers = #tpu.dot_dimension_numbers<[1], [0], [0], [1], [0, 0, 1, 1], [], []>} : vector<64x128xbf16>, vector<128x128xbf16>, vector<64x128xf32> -> vector<64x128xf32>
    %70 = arith.addf %61, %69 : vector<64x128xf32>
    %c24 = arith.constant 24 : index
    %c0_53 = arith.constant 0 : index
    %71 = vector.load %arg11[%c24, %c0_53] : memref<96x128xf32, #tpu.memory_space<vmem>>, vector<64x128xf32>
    %72 = arith.truncf %71 : vector<64x128xf32> to vector<64x128xbf16>
    %c7_54 = arith.constant 7 : index
    %c0_55 = arith.constant 0 : index
    %c0_56 = arith.constant 0 : index
    %73 = vector.load %arg4[%c7_54, %c0_55, %c0_56] : memref<9x128x128xbf16, #tpu.memory_space<vmem>>, vector<1x128x128xbf16>
    %74 = vector.shape_cast %73 : vector<1x128x128xbf16> to vector<128x128xbf16>
    %cst_57 = arith.constant dense<0.000000e+00> : vector<64x128xf32>
    %75 = tpu.matmul %72, %74, %cst_57 {dimension_numbers = #tpu.dot_dimension_numbers<[1], [0], [0], [1], [0, 0, 1, 1], [], []>} : vector<64x128xbf16>, vector<128x128xbf16>, vector<64x128xf32> -> vector<64x128xf32>
    %76 = arith.addf %70, %75 : vector<64x128xf32>
    %c25 = arith.constant 25 : index
    %c0_58 = arith.constant 0 : index
    %77 = vector.load %arg11[%c25, %c0_58] : memref<96x128xf32, #tpu.memory_space<vmem>>, vector<64x128xf32>
    %c0_59 = arith.constant 0 : index
    %c0_60 = arith.constant 0 : index
    %78 = vector.load %arg9[%c0_59, %c0_60] : memref<64x1xf32, #tpu.memory_space<vmem>>, vector<64x1xf32>
    %79 = vector.broadcast %78 : vector<64x1xf32> to vector<64x128xf32>
    %80 = arith.mulf %77, %79 : vector<64x128xf32>
    %81 = arith.truncf %80 : vector<64x128xf32> to vector<64x128xbf16>
    %c8_61 = arith.constant 8 : index
    %c0_62 = arith.constant 0 : index
    %c0_63 = arith.constant 0 : index
    %82 = vector.load %arg4[%c8_61, %c0_62, %c0_63] : memref<9x128x128xbf16, #tpu.memory_space<vmem>>, vector<1x128x128xbf16>
    %83 = vector.shape_cast %82 : vector<1x128x128xbf16> to vector<128x128xbf16>
    %cst_64 = arith.constant dense<0.000000e+00> : vector<64x128xf32>
    %84 = tpu.matmul %81, %83, %cst_64 {dimension_numbers = #tpu.dot_dimension_numbers<[1], [0], [0], [1], [0, 0, 1, 1], [], []>} : vector<64x128xbf16>, vector<128x128xbf16>, vector<64x128xf32> -> vector<64x128xf32>
    %85 = arith.addf %76, %84 : vector<64x128xf32>
    %cst_65 = arith.constant 0.000000e+00 : f32
    %86 = vector.broadcast %cst_65 : f32 to vector<64x128xf32>
    %87 = arith.maximumf %85, %86 : vector<64x128xf32>
    %88 = arith.truncf %87 : vector<64x128xf32> to vector<64x128xbf16>
    %c0_66 = arith.constant 0 : index
    %c0_67 = arith.constant 0 : index
    %89 = vector.load %arg6[%c0_66, %c0_67] : memref<128x128xbf16, #tpu.memory_space<vmem>>, vector<128x128xbf16>
    %cst_68 = arith.constant dense<0.000000e+00> : vector<64x128xf32>
    %90 = tpu.matmul %88, %89, %cst_68 {dimension_numbers = #tpu.dot_dimension_numbers<[1], [0], [0], [1], [0, 0, 1, 1], [], []>} : vector<64x128xbf16>, vector<128x128xbf16>, vector<64x128xf32> -> vector<64x128xf32>
    %c0_69 = arith.constant 0 : index
    %c0_70 = arith.constant 0 : index
    %91 = vector.load %arg7[%c0_69, %c0_70] : memref<1x128xf32, #tpu.memory_space<vmem>>, vector<1x128xf32>
    %92 = vector.broadcast %91 : vector<1x128xf32> to vector<64x128xf32>
    %93 = arith.addf %90, %92 : vector<64x128xf32>
    %94 = arith.extf %1 : vector<64x128xbf16> to vector<64x128xf32>
    %95 = arith.addf %93, %94 : vector<64x128xf32>
    %cst_71 = arith.constant 0.000000e+00 : f32
    %96 = vector.broadcast %cst_71 : f32 to vector<64x128xf32>
    %97 = arith.maximumf %95, %96 : vector<64x128xf32>
    %c0_72 = arith.constant 0 : index
    %c0_73 = arith.constant 0 : index
    %c0_74 = arith.constant 0 : index
    %98 = vector.load %arg10[%c0_72, %c0_73, %c0_74] : memref<1x64x128xf32, #tpu.memory_space<vmem>>, vector<1x64x128xf32>
    %99 = vector.shape_cast %98 : vector<1x64x128xf32> to vector<64x128xf32>
    %100 = vector.shape_cast %97 : vector<64x128xf32> to vector<1x64x128xf32>
    tpu.vector_store %arg10[%c0_72, %c0_73, %c0_74], %100 {strides = array<i32>} : memref<1x64x128xf32, #tpu.memory_space<vmem>>, vector<1x64x128xf32>,
    return
  }
  func.func @transform_0(%arg0: i32) -> (i32, i32, i32) {
    %c0_i32 = arith.constant 0 : i32
    %c0_i32_0 = arith.constant 0 : i32
    %c0_i32_1 = arith.constant 0 : i32
    return %arg0, %c0_i32, %c0_i32_0 : i32, i32, i32
  }
  func.func @transform_1(%arg0: i32) -> (i32, i32) {
    %c0_i32 = arith.constant 0 : i32
    %c0_i32_0 = arith.constant 0 : i32
    %c0_i32_1 = arith.constant 0 : i32
    return %c0_i32, %c0_i32_0 : i32, i32
  }
  func.func @transform_2(%arg0: i32) -> (i32, i32) {
    %c0_i32 = arith.constant 0 : i32
    %c0_i32_0 = arith.constant 0 : i32
    %c0_i32_1 = arith.constant 0 : i32
    return %c0_i32, %c0_i32_0 : i32, i32
  }
  func.func @transform_3(%arg0: i32) -> (i32, i32, i32) {
    %c0_i32 = arith.constant 0 : i32
    %c0_i32_0 = arith.constant 0 : i32
    %c0_i32_1 = arith.constant 0 : i32
    %c0_i32_2 = arith.constant 0 : i32
    return %c0_i32, %c0_i32_0, %c0_i32_1 : i32, i32, i32
  }
  func.func @transform_4(%arg0: i32) -> (i32, i32) {
    %c0_i32 = arith.constant 0 : i32
    %c0_i32_0 = arith.constant 0 : i32
    %c0_i32_1 = arith.constant 0 : i32
    return %c0_i32, %c0_i32_0 : i32, i32
  }
  func.func @transform_5(%arg0: i32) -> (i32, i32) {
    %c0_i32 = arith.constant 0 : i32
    %c0_i32_0 = arith.constant 0 : i32
    %c0_i32_1 = arith.constant 0 : i32
    return %c0_i32, %c0_i32_0 : i32, i32
  }
  func.func @transform_6(%arg0: i32) -> (i32, i32) {
    %c0_i32 = arith.constant 0 : i32
    %c0_i32_0 = arith.constant 0 : i32
    %c0_i32_1 = arith.constant 0 : i32
    return %c0_i32, %c0_i32_0 : i32, i32
  }
  func.func @transform_7(%arg0: i32) -> (i32, i32) {
    %c0_i32 = arith.constant 0 : i32
    %c0_i32_0 = arith.constant 0 : i32
    %c0_i32_1 = arith.constant 0 : i32
    return %c0_i32, %c0_i32_0 : i32, i32
  }
  func.func @transform_8(%arg0: i32) -> (i32, i32) {
    %c0_i32 = arith.constant 0 : i32
    %c0_i32_0 = arith.constant 0 : i32
    %c0_i32_1 = arith.constant 0 : i32
    return %c0_i32, %c0_i32_0 : i32, i32
  }
  func.func @transform_9(%arg0: i32) -> (i32, i32, i32) {
    %c0_i32 = arith.constant 0 : i32
    %c0_i32_0 = arith.constant 0 : i32
    %c0_i32_1 = arith.constant 0 : i32
    return %arg0, %c0_i32, %c0_i32_0 : i32, i32, i32
  }
}

</mosaic_0001>

<llo_original>
// kernel: tpu_custom_call.1
$region0: #{tpu_custom_call.1}
  #allocation0 [shape = 'u32[]', space=smem, size = 0x4, offset = 0x4, fixed_abs, tag = 'smem constant byte address 0x4 - core index']
  #allocation1 [shape = 'u32[144,128]{1,0:T(1,128)}', space=vmem, size = 0x12000, scoped, tag = 'internal scratch']
  #allocation2 [shape = 'f32[96,128]{1,0:T(8,128)}', space=vmem, size = 0xc000, scoped, tag = 'scratch operand']
  %s0 = inlined_call_operand.vmem [shape: bf16[2,64,128], index: 0, kind: input, shape index: {}]
  %s1 = inlined_call_operand.vmem [shape: bf16[128,128], index: 1, kind: input, shape index: {}]
  %s2 = inlined_call_operand.vmem [shape: f32[1,128], index: 2, kind: input, shape index: {}]
  %s3 = inlined_call_operand.hbm [shape: bf16[9,128,128], index: 3, kind: input, shape index: {}]
  %s4 = inlined_call_operand.vmem [shape: f32[1,128], index: 4, kind: input, shape index: {}]
  %s5 = inlined_call_operand.hbm [shape: bf16[128,128], index: 5, kind: input, shape index: {}]
  %s6 = inlined_call_operand.vmem [shape: f32[1,128], index: 6, kind: input, shape index: {}]
  %s7 = inlined_call_operand.vmem [shape: f32[64,1], index: 7, kind: input, shape index: {}]
  %s8 = inlined_call_operand.vmem [shape: f32[64,1], index: 8, kind: input, shape index: {}]
  %s9 = inlined_call_operand.hbm [shape: f32[2,64,128], index: 9, kind: output, shape index: {}]
  %s10 = sld [smem:[#allocation0]]
  $region77: #{tpu_custom_call.1} parent=0
    _
  %s12 = ssub.s32 1, %s10
  %s13 = scalar_select 0, %s12, %s10
  $region1: #{tpu_custom_call.1} parent=0
    #allocation3 [shape = 'u8[294912]{0}', space=vmem, size = 0x48000, scoped, tag = 'input window, operand 3, single buffered']
    #allocation4 [shape = 's32[2]{0}', space=sflag, size = 0x8, scoped, tag = 'scoped memory for tpu_custom_call.1']
    #allocation5 [shape = 's32[2]{0}', space=sflag, size = 0x8, scoped, tag = 'scoped memory for tpu_custom_call.1']
    #allocation6 [shape = 'u8[32768]{0}', space=vmem, size = 0x8000, scoped, tag = 'input window, operand 5, single buffered']
    #allocation7 [shape = 's32[1]{0}', space=sflag, size = 0x4, scoped, tag = 'scoped memory for tpu_custom_call.1']
    #allocation8 [shape = 'u8[65536]{0}', space=vmem, size = 0x10000, scoped, tag = 'output window, operand 0']
    %14 = vsyncpa [#allocation4], 0
    %15 = vsyncpa [#allocation7], 0
    %16 = vsyncpa [#allocation5], 0
    %s17 = scalar_lea.sflag [#allocation5], 1
    %18 = vsyncpa %s17, 0
    loop: start=0, step=1, limit=4
    $region2: #{tpu_custom_call.1} parent=1 // loop_pre_header
      _
    $region3: #{tpu_custom_call.1} parent=1 // loop_header
      %s20 = sphi 0, %s24
      %p21 = scmp.ge.s32.totalorder %s20, 4
      %s30 = sphi 0, %s32
      %s33 = sphi 0, %s30
      %s34 = sphi 0, %s33
      %s50 = sphi 0, %s34
      %s54 = sphi 0, %s54
      %s56 = sphi 0, %s54
      %s57 = sphi 0, %s56
      %s71 = sphi 0, %s57
      %s75 = sphi 0, %s75
      %s77 = sphi 0, %s75
      %s78 = sphi 0, %s77
      %s92 = sphi 0, %s78
      %s96 = sphi 0, %s96
      %s98 = sphi 0, %s96
      %s99 = sphi 0, %s98
      %s113 = sphi 0, %s99
      %s117 = sphi 0, %s117
      %s119 = sphi 0, %s117
      %s120 = sphi 0, %s119
      %s134 = sphi 0, %s120
      %s138 = sphi 0, %s138
      %s140 = sphi 0, %s138
      %s141 = sphi 0, %s140
      %s155 = sphi 0, %s141
      %s159 = sphi 0, %s159
      %s161 = sphi 0, %s159
      %s162 = sphi 0, %s161
      %s176 = sphi 0, %s162
      %s180 = sphi 0, %s180
      %s182 = sphi 0, %s180
      %s183 = sphi 0, %s182
      %s197 = sphi 0, %s183
      %s201 = sphi 0, %s201
      %s203 = sphi 0, %s201
      %s204 = sphi 0, %s203
      %s218 = sphi 0, %s204
      %s224 = sphi 0, %s226
      %s227 = sphi 0, %s224
      %s228 = sphi 0, %s227
      %s244 = sphi 0, %s228
    $region4: #{tpu_custom_call.1} parent=1 // loop_header_branch
      %23 = sbr.rel (%p21) target = $region8
    $region5: #{tpu_custom_call.1} parent=1 // loop_body
      %s25 = ssub.s32 %s20, 1
      %s26 = ssub.s32 %s20, 2
      %s27 = sadd.s32 %s20, 1
      %s28 = ssub.s32 %s20, %s27
      %p29 = scmp.eq.s32.totalorder %s28, 0
      %s31 = sadd.s32 %s30, 1
      %s32 = scalar_select %p29, %s30, %s31
      %p35 = pneg %p29
      %p36 = scmp.eq.s32.totalorder %s20, 1
      %p37 = por %p35, %p36
      %p38 = scmp.ne.s32.totalorder %s30, %s33
      %p39 = scmp.eq.s32.totalorder %s20, 0
      %p40 = por %p38, %p39
      %p41 = scmp.ne.s32.totalorder %s30, %s33
      %p42 = scmp.eq.s32.totalorder %s25, 1
      %p43 = por %p41, %p42
      %p44 = scmp.ne.s32.totalorder %s33, %s34
      %p45 = scmp.eq.s32.totalorder %s25, 0
      %p46 = por %p44, %p45
      %p47 = scmp.ne.s32.totalorder %s33, %s34
      %p48 = scmp.eq.s32.totalorder %s26, 1
      %p49 = por %p47, %p48
      %p51 = scmp.ne.s32.totalorder %s34, %s50
      %p52 = scmp.eq.s32.totalorder %s26, 0
      %p53 = por %p51, %p52
      %s55 = sadd.s32 %s54, 1
      %p58 = scmp.eq.s32.totalorder %s20, 1
      %p59 = scmp.ne.s32.totalorder %s54, %s56
      %p60 = scmp.eq.s32.totalorder %s20, 0
      %p61 = por %p59, %p60
      %p62 = scmp.ne.s32.totalorder %s54, %s56
      %p63 = scmp.eq.s32.totalorder %s25, 1
      %p64 = por %p62, %p63
      %p65 = scmp.ne.s32.totalorder %s56, %s57
      %p66 = scmp.eq.s32.totalorder %s25, 0
      %p67 = por %p65, %p66
      %p68 = scmp.ne.s32.totalorder %s56, %s57
      %p69 = scmp.eq.s32.totalorder %s26, 1
      %p70 = por %p68, %p69
      %p72 = scmp.ne.s32.totalorder %s57, %s71
      %p73 = scmp.eq.s32.totalorder %s26, 0
      %p74 = por %p72, %p73
      %s76 = sadd.s32 %s75, 1
      %p79 = scmp.eq.s32.totalorder %s20, 1
      %p80 = scmp.ne.s32.totalorder %s75, %s77
      %p81 = scmp.eq.s32.totalorder %s20, 0
      %p82 = por %p80, %p81
      %p83 = scmp.ne.s32.totalorder %s75, %s77
      %p84 = scmp.eq.s32.totalorder %s25, 1
      %p85 = por %p83, %p84
      %p86 = scmp.ne.s32.totalorder %s77, %s78
      %p87 = scmp.eq.s32.totalorder %s25, 0
      %p88 = por %p86, %p87
      %p89 = scmp.ne.s32.totalorder %s77, %s78
      %p90 = scmp.eq.s32.totalorder %s26, 1
      %p91 = por %p89, %p90
      %p93 = scmp.ne.s32.totalorder %s78, %s92
      %p94 = scmp.eq.s32.totalorder %s26, 0
      %p95 = por %p93, %p94
      %s97 = sadd.s32 %s96, 1
      %p100 = scmp.eq.s32.totalorder %s20, 1
      %p101 = scmp.ne.s32.totalorder %s96, %s98
      %p102 = scmp.eq.s32.totalorder %s20, 0
      %p103 = por %p101, %p102
      %p104 = scmp.ne.s32.totalorder %s96, %s98
      %p105 = scmp.eq.s32.totalorder %s25, 1
      %p106 = por %p104, %p105
      %p107 = scmp.ne.s32.totalorder %s98, %s99
      %p108 = scmp.eq.s32.totalorder %s25, 0
      %p109 = por %p107, %p108
      %p110 = scmp.ne.s32.totalorder %s98, %s99
      %p111 = scmp.eq.s32.totalorder %s26, 1
      %p112 = por %p110, %p111
      %p114 = scmp.ne.s32.totalorder %s99, %s113
      %p115 = scmp.eq.s32.totalorder %s26, 0
      %p116 = por %p114, %p115
      %s118 = sadd.s32 %s117, 1
      %p121 = scmp.eq.s32.totalorder %s20, 1
      %p122 = scmp.ne.s32.totalorder %s117, %s119
      %p123 = scmp.eq.s32.totalorder %s20, 0
      %p124 = por %p122, %p123
      %p125 = scmp.ne.s32.totalorder %s117, %s119
      %p126 = scmp.eq.s32.totalorder %s25, 1
      %p127 = por %p125, %p126
      %p128 = scmp.ne.s32.totalorder %s119, %s120
      %p129 = scmp.eq.s32.totalorder %s25, 0
      %p130 = por %p128, %p129
      %p131 = scmp.ne.s32.totalorder %s119, %s120
      %p132 = scmp.eq.s32.totalorder %s26, 1
      %p133 = por %p131, %p132
      %p135 = scmp.ne.s32.totalorder %s120, %s134
      %p136 = scmp.eq.s32.totalorder %s26, 0
      %p137 = por %p135, %p136
      %s139 = sadd.s32 %s138, 1
      %p142 = scmp.eq.s32.totalorder %s20, 1
      %p143 = scmp.ne.s32.totalorder %s138, %s140
      %p144 = scmp.eq.s32.totalorder %s20, 0
      %p145 = por %p143, %p144
      %p146 = scmp.ne.s32.totalorder %s138, %s140
      %p147 = scmp.eq.s32.totalorder %s25, 1
      %p148 = por %p146, %p147
      %p149 = scmp.ne.s32.totalorder %s140, %s141
      %p150 = scmp.eq.s32.totalorder %s25, 0
      %p151 = por %p149, %p150
      %p152 = scmp.ne.s32.totalorder %s140, %s141
      %p153 = scmp.eq.s32.totalorder %s26, 1
      %p154 = por %p152, %p153
      %p156 = scmp.ne.s32.totalorder %s141, %s155
      %p157 = scmp.eq.s32.totalorder %s26, 0
      %p158 = por %p156, %p157
      %s160 = sadd.s32 %s159, 1
      %p163 = scmp.eq.s32.totalorder %s20, 1
      %p164 = scmp.ne.s32.totalorder %s159, %s161
      %p165 = scmp.eq.s32.totalorder %s20, 0
      %p166 = por %p164, %p165
      %p167 = scmp.ne.s32.totalorder %s159, %s161
      %p168 = scmp.eq.s32.totalorder %s25, 1
      %p169 = por %p167, %p168
      %p170 = scmp.ne.s32.totalorder %s161, %s162
      %p171 = scmp.eq.s32.totalorder %s25, 0
      %p172 = por %p170, %p171
      %p173 = scmp.ne.s32.totalorder %s161, %s162
      %p174 = scmp.eq.s32.totalorder %s26, 1
      %p175 = por %p173, %p174
      %p177 = scmp.ne.s32.totalorder %s162, %s176
      %p178 = scmp.eq.s32.totalorder %s26, 0
      %p179 = por %p177, %p178
      %s181 = sadd.s32 %s180, 1
      %p184 = scmp.eq.s32.totalorder %s20, 1
      %p185 = scmp.ne.s32.totalorder %s180, %s182
      %p186 = scmp.eq.s32.totalorder %s20, 0
      %p187 = por %p185, %p186
      %p188 = scmp.ne.s32.totalorder %s180, %s182
      %p189 = scmp.eq.s32.totalorder %s25, 1
      %p190 = por %p188, %p189
      %p191 = scmp.ne.s32.totalorder %s182, %s183
      %p192 = scmp.eq.s32.totalorder %s25, 0
      %p193 = por %p191, %p192
      %p194 = scmp.ne.s32.totalorder %s182, %s183
      %p195 = scmp.eq.s32.totalorder %s26, 1
      %p196 = por %p194, %p195
      %p198 = scmp.ne.s32.totalorder %s183, %s197
      %p199 = scmp.eq.s32.totalorder %s26, 0
      %p200 = por %p198, %p199
      %s202 = sadd.s32 %s201, 1
      %p205 = scmp.eq.s32.totalorder %s20, 1
      %p206 = scmp.ne.s32.totalorder %s201, %s203
      %p207 = scmp.eq.s32.totalorder %s20, 0
      %p208 = por %p206, %p207
      %p209 = scmp.ne.s32.totalorder %s201, %s203
      %p210 = scmp.eq.s32.totalorder %s25, 1
      %p211 = por %p209, %p210
      %p212 = scmp.ne.s32.totalorder %s203, %s204
      %p213 = scmp.eq.s32.totalorder %s25, 0
      %p214 = por %p212, %p213
      %p215 = scmp.ne.s32.totalorder %s203, %s204
      %p216 = scmp.eq.s32.totalorder %s26, 1
      %p217 = por %p215, %p216
      %p219 = scmp.ne.s32.totalorder %s204, %s218
      %p220 = scmp.eq.s32.totalorder %s26, 0
      %p221 = por %p219, %p220
      %s222 = ssub.s32 %s20, %s27
      %p223 = scmp.eq.s32.totalorder %s222, 0
      %s225 = sadd.s32 %s224, 1
      %s226 = scalar_select %p223, %s224, %s225
      %p229 = pneg %p223
      %p230 = scmp.eq.s32.totalorder %s20, 1
      %p231 = por %p229, %p230
      %p232 = scmp.ne.s32.totalorder %s224, %s227
      %p233 = scmp.eq.s32.totalorder %s20, 0
      %p234 = por %p232, %p233
      %p235 = scmp.ne.s32.totalorder %s224, %s227
      %p236 = scmp.eq.s32.totalorder %s25, 1
      %p237 = por %p235, %p236
      %p238 = scmp.ne.s32.totalorder %s227, %s228
      %p239 = scmp.eq.s32.totalorder %s25, 0
      %p240 = por %p238, %p239
      %p241 = scmp.ne.s32.totalorder %s227, %s228
      %p242 = scmp.eq.s32.totalorder %s26, 1
      %p243 = por %p241, %p242
      %p245 = scmp.ne.s32.totalorder %s228, %s244
      %p246 = scmp.eq.s32.totalorder %s26, 0
      %p247 = por %p245, %p246
      %p248 = scmp.le.s32.totalorder 1, %s20
      %p249 = scmp.lt.s32.totalorder %s20, 3
      %p250 = pnand %p248, %p249
      %p251 = pneg %p250
      // Predicated region
      $region9: #{tpu_custom_call.1} parent=5 // pred_check
        _
      $region10: #{tpu_custom_call.1} parent=5 // pred_check_branch
        %253 = sbr.rel (%p250) target = $region12
      $region11: #{tpu_custom_call.1} parent=5 // pred_region
        %s254 = ssub.s32 %s20, 1
        // Predicated region
        $region13: #{tpu_custom_call.1} parent=11 // pred_check
          %p255 = pneg %p67
        $region14: #{tpu_custom_call.1} parent=11 // pred_check_branch
          %257 = sbr.rel (%p255) target = $region16
        $region15: #{tpu_custom_call.1} parent=11 // pred_region
          _
        $region16: #{tpu_custom_call.1} parent=11 // pred_fallthru
          _
        // Predicated region
        $region17: #{tpu_custom_call.1} parent=11 // pred_check
          %p258 = pneg %p88
        $region18: #{tpu_custom_call.1} parent=11 // pred_check_branch
          %260 = sbr.rel (%p258) target = $region20
        $region19: #{tpu_custom_call.1} parent=11 // pred_region
          _
        $region20: #{tpu_custom_call.1} parent=11 // pred_fallthru
          _
        // Predicated region
        $region21: #{tpu_custom_call.1} parent=11 // pred_check
          %p261 = pneg %p109
        $region22: #{tpu_custom_call.1} parent=11 // pred_check_branch
          %263 = sbr.rel (%p261) target = $region24
        $region23: #{tpu_custom_call.1} parent=11 // pred_region
          %s265 = ssub.s32 9216, 9216
          %266 = vsyncadd [#allocation4], %s265
          %s267 = sshll.u32 [#allocation3], 4
          %s268 = int_to_ptr.vmem [resolvable:$true] %s267
          %273 = dma.hbm_to_vmem [thread:$0]  %s3, 9216, %s268, [#allocation4], 64, 64, 4
        $region24: #{tpu_custom_call.1} parent=11 // pred_fallthru
          _
        // Predicated region
        $region25: #{tpu_custom_call.1} parent=11 // pred_check
          %p274 = pneg %p130
        $region26: #{tpu_custom_call.1} parent=11 // pred_check_branch
          %276 = sbr.rel (%p274) target = $region28
        $region27: #{tpu_custom_call.1} parent=11 // pred_region
          _
        $region28: #{tpu_custom_call.1} parent=11 // pred_fallthru
          _
        // Predicated region
        $region29: #{tpu_custom_call.1} parent=11 // pred_check
          %p277 = pneg %p151
        $region30: #{tpu_custom_call.1} parent=11 // pred_check_branch
          %279 = sbr.rel (%p277) target = $region32
        $region31: #{tpu_custom_call.1} parent=11 // pred_region
          %s281 = ssub.s32 1024, 1024
          %282 = vsyncadd [#allocation7], %s281
          %s283 = sshll.u32 [#allocation6], 4
          %s284 = int_to_ptr.vmem [resolvable:$true] %s283
          %289 = dma.hbm_to_vmem [thread:$0]  %s5, 1024, %s284, [#allocation7], 64, 64, 4
        $region32: #{tpu_custom_call.1} parent=11 // pred_fallthru
          _
        // Predicated region
        $region33: #{tpu_custom_call.1} parent=11 // pred_check
          %p290 = pneg %p172
        $region34: #{tpu_custom_call.1} parent=11 // pred_check_branch
          %292 = sbr.rel (%p290) target = $region36
        $region35: #{tpu_custom_call.1} parent=11 // pred_region
          _
        $region36: #{tpu_custom_call.1} parent=11 // pred_fallthru
          _
        // Predicated region
        $region37: #{tpu_custom_call.1} parent=11 // pred_check
          %p293 = pneg %p193
        $region38: #{tpu_custom_call.1} parent=11 // pred_check_branch
          %295 = sbr.rel (%p293) target = $region40
        $region39: #{tpu_custom_call.1} parent=11 // pred_region
          _
        $region40: #{tpu_custom_call.1} parent=11 // pred_fallthru
          _
        // Predicated region
        $region41: #{tpu_custom_call.1} parent=11 // pred_check
          %p296 = pneg %p214
        $region42: #{tpu_custom_call.1} parent=11 // pred_check_branch
          %298 = sbr.rel (%p296) target = $region44
        $region43: #{tpu_custom_call.1} parent=11 // pred_region
          _
        $region44: #{tpu_custom_call.1} parent=11 // pred_fallthru
          _
      $region12: #{tpu_custom_call.1} parent=5 // pred_fallthru
        _
      %p299 = scmp.lt.s32.totalorder %s20, 2
      // Predicated region
      $region45: #{tpu_custom_call.1} parent=5 // pred_check
        %p300 = pneg %p299
      $region46: #{tpu_custom_call.1} parent=5 // pred_check_branch
        %302 = sbr.rel (%p300) target = $region48
      $region47: #{tpu_custom_call.1} parent=5 // pred_region
        // Predicated region
        $region49: #{tpu_custom_call.1} parent=47 // pred_check
          %p303 = pneg %p40
        $region50: #{tpu_custom_call.1} parent=47 // pred_check_branch
          %305 = sbr.rel (%p303) target = $region52
        $region51: #{tpu_custom_call.1} parent=47 // pred_region
          %p306 = scmp.lt.s32.totalorder %s20, 1
          %s307 = scalar_select %p306, %s20, 1
          %s308 = smul.addr %s307, 8
          %s309 = smul.addr %s308, 4
          %s310 = scalar_lea.vmem %s0, %s309
        $region52: #{tpu_custom_call.1} parent=47 // pred_fallthru
          _
      $region48: #{tpu_custom_call.1} parent=5 // pred_fallthru
        _
      %p311 = scmp.le.s32.totalorder 1, %s20
      %p312 = scmp.lt.s32.totalorder %s20, 3
      %p313 = pnand %p311, %p312
      %p314 = pneg %p313
      // Predicated region
      $region53: #{tpu_custom_call.1} parent=5 // pred_check
        _
      $region54: #{tpu_custom_call.1} parent=5 // pred_check_branch
        %316 = sbr.rel (%p313) target = $region56
      $region55: #{tpu_custom_call.1} parent=5 // pred_region
        %s317 = ssub.s32 %s20, 1
        // Predicated region
        $region57: #{tpu_custom_call.1} parent=55 // pred_check
          %p318 = pneg %p109
        $region58: #{tpu_custom_call.1} parent=55 // pred_check_branch
          %320 = sbr.rel (%p318) target = $region60
        $region59: #{tpu_custom_call.1} parent=55 // pred_region
          %321 = dma.done [#allocation4], 9216
        $region60: #{tpu_custom_call.1} parent=55 // pred_fallthru
          _
        // Predicated region
        $region61: #{tpu_custom_call.1} parent=55 // pred_check
          %p322 = pneg %p151
        $region62: #{tpu_custom_call.1} parent=55 // pred_check_branch
          %324 = sbr.rel (%p322) target = $region64
        $region63: #{tpu_custom_call.1} parent=55 // pred_region
          %325 = dma.done [#allocation7], 1024
        $region64: #{tpu_custom_call.1} parent=55 // pred_fallthru
          _
        %p326 = scmp.lt.s32.totalorder %s25, 1
        %s327 = scalar_select %p326, %s25, 1
        %s328 = smul.addr %s327, 8
        %s329 = smul.addr %s328, 4
        %s330 = scalar_lea.vmem %s0, %s329
        %p331 = pneg %p46
        %p332 = pneg %p43
        %p333 = pneg %p67
        %p334 = pneg %p64
        %p335 = pneg %p88
        %p336 = pneg %p85
        %p337 = pneg %p109
        %p338 = pneg %p106
        %p339 = pneg %p130
        %p340 = pneg %p127
        %p341 = pneg %p151
        %p342 = pneg %p148
        %p343 = pneg %p172
        %p344 = pneg %p169
        %p345 = pneg %p193
        %p346 = pneg %p190
        %p347 = pneg %p214
        %p348 = pneg %p211
        %p349 = pneg %p240
        %p350 = pneg %p237
        %s351 = sand.u32 %s227, 1
        %s352 = scalar_lea.sflag [#allocation5], %s351
        %s353 = sand.u32 %s227, 1
        %s354 = smul.addr %s353, 64
        %s355 = scalar_lea.vmem [#allocation8], %s354
        %p356 = scmp.lt.s32.totalorder %s25, 1
        %s357 = scalar_select %p356, %s25, 1
        %s358 = smul.addr %s357, 8
        %s359 = smul.addr %s358, 4
        %s360 = scalar_lea.vmem %s0, %s359
        %v362 = vld [vmem:[%s360] sm:$0xf]
        %v363 = vld [vmem:[%s360 + $0x4] sm:$0xf]
        %v364 = vld [vmem:[%s360 + $0x8] sm:$0xf]
        %v365 = vld [vmem:[%s360 + $0xc] sm:$0xf]
        %v366 = vld [vmem:[%s360 + $0x10] sm:$0xf]
        %v367 = vld [vmem:[%s360 + $0x14] sm:$0xf]
        %v368 = vld [vmem:[%s360 + $0x18] sm:$0xf]
        %v369 = vld [vmem:[%s360 + $0x1c] sm:$0xf]
        %v370 = vld [vmem:[%s1] sm:$0xf]
        %v371 = vld [vmem:[%s1 + $0x4] sm:$0xf]
        %v372 = vld [vmem:[%s1 + $0x8] sm:$0xf]
        %v373 = vld [vmem:[%s1 + $0xc] sm:$0xf]
        %v374 = vld [vmem:[%s1 + $0x10] sm:$0xf]
        %v375 = vld [vmem:[%s1 + $0x14] sm:$0xf]
        %v376 = vld [vmem:[%s1 + $0x18] sm:$0xf]
        %v377 = vld [vmem:[%s1 + $0x1c] sm:$0xf]
        %v378 = vld [vmem:[%s1 + $0x20] sm:$0xf]
        %v379 = vld [vmem:[%s1 + $0x24] sm:$0xf]
        %v380 = vld [vmem:[%s1 + $0x28] sm:$0xf]
        %v381 = vld [vmem:[%s1 + $0x2c] sm:$0xf]
        %v382 = vld [vmem:[%s1 + $0x30] sm:$0xf]
        %v383 = vld [vmem:[%s1 + $0x34] sm:$0xf]
        %v384 = vld [vmem:[%s1 + $0x38] sm:$0xf]
        %v385 = vld [vmem:[%s1 + $0x3c] sm:$0xf]
        %v386 = vld [vmem:[%s2] sm:$0x1]
        %v388 = vlaneseq
        %v389 = vshrl.u32 %v388, 7
        %v390 = vsub.s32 0, %v389
        %v391 = vrot.slane %v386, %v390
        %v401 = vunpack.c.l.b16 %v362
        %v402 = vunpack.c.l.b16 %v363
        %v403 = vunpack.c.l.b16 %v364
        %v404 = vunpack.c.l.b16 %v365
        %v405 = vunpack.c.l.b16 %v366
        %v406 = vunpack.c.l.b16 %v367
        %v407 = vunpack.c.l.b16 %v368
        %v408 = vunpack.c.l.b16 %v369
        %v409 = vpack.c.b16 %v402, %v401
        %v410 = vpack.c.b16 %v404, %v403
        %v411 = vpack.c.b16 %v406, %v405
        %v412 = vpack.c.b16 %v408, %v407
        %v433 = vunpack.c.l.b16 %v370
        %v434 = vunpack.c.l.b16 %v371
        %v435 = vunpack.c.l.b16 %v372
        %v436 = vunpack.c.l.b16 %v373
        %v437 = vunpack.c.l.b16 %v374
        %v438 = vunpack.c.l.b16 %v375
        %v439 = vunpack.c.l.b16 %v376
        %v440 = vunpack.c.l.b16 %v377
        %v441 = vunpack.c.l.b16 %v378
        %v442 = vunpack.c.l.b16 %v379
        %v443 = vunpack.c.l.b16 %v380
        %v444 = vunpack.c.l.b16 %v381
        %v445 = vunpack.c.l.b16 %v382
        %v446 = vunpack.c.l.b16 %v383
        %v447 = vunpack.c.l.b16 %v384
        %v448 = vunpack.c.l.b16 %v385
        %v449 = vpack.c.b16 %v434, %v433
        %v450 = vpack.c.b16 %v436, %v435
        %v451 = vpack.c.b16 %v438, %v437
        %v452 = vpack.c.b16 %v440, %v439
        %v453 = vpack.c.b16 %v442, %v441
        %v454 = vpack.c.b16 %v444, %v443
        %v455 = vpack.c.b16 %v446, %v445
        %v456 = vpack.c.b16 %v448, %v447
        %465 = vmatprep.subr.bf16.mxu0 0
        %466 = vmatpush1.bf16.msra.mxu0 %v449
        %467 = vmatprep.subr.bf16.mxu0 0
        %468 = vmatpush1.bf16.msra.mxu0 %v450
        %469 = vmatprep.subr.bf16.mxu0 0
        %470 = vmatpush1.bf16.msra.mxu0 %v451
        %471 = vmatprep.subr.bf16.mxu0 0
        %472 = vmatpush1.bf16.msra.mxu0 %v452
        %473 = vmatprep.subr.bf16.mxu0 0
        %474 = vmatpush1.bf16.msra.mxu0 %v453
        %475 = vmatprep.subr.bf16.mxu0 0
        %476 = vmatpush1.bf16.msra.mxu0 %v454
        %477 = vmatprep.subr.bf16.mxu0 0
        %478 = vmatpush1.bf16.msra.mxu0 %v455
        %479 = vmatprep.subr.bf16.mxu0 0
        %480 = vmatpush1.bf16.msra.mxu0 %v456
        %481 = vmatprep.subr.bf16.mxu0 0
        %482 = vmatpush1.bf16.msra.mxu0 0
        %483 = vmatprep.subr.bf16.mxu0 0
        %484 = vmatpush1.bf16.msra.mxu0 0
        %485 = vmatprep.subr.bf16.mxu0 0
        %486 = vmatpush1.bf16.msra.mxu0 0
        %487 = vmatprep.subr.bf16.mxu0 0
        %488 = vmatpush1.bf16.msra.mxu0 0
        %489 = vmatprep.subr.bf16.mxu0 0
        %490 = vmatpush1.bf16.msra.mxu0 0
        %491 = vmatprep.subr.bf16.mxu0 0
        %492 = vmatpush1.bf16.msra.mxu0 0
        %493 = vmatprep.subr.bf16.mxu0 0
        %494 = vmatpush1.bf16.msra.mxu0 0
        %495 = vmatprep.subr.bf16.mxu0 0
        %496 = vmatpush1.bf16.msra.mxu0 0
        %497 = vmatprep.mubr.bf16.mxu0 0
        %498 = vmatmul.mubr.bf16.gmra.mrb[0].mxu0 %v409
        %v499 = vpop.f32.mrb[0].mxu0
        %v500 = vadd.f32 %v391, %v499
        %v501 = vpop.f32.mrb[0].mxu0
        %v502 = vpop.f32.mrb[0].mxu0
        %v503 = vadd.f32 %v391, %v502
        %v504 = vpop.f32.mrb[0].mxu0
        %505 = vmatprep.mubr.bf16.mxu0 0
        %506 = vmatmul.mubr.bf16.gmra.mrb[0].mxu0 %v410
        %v507 = vpop.f32.mrb[0].mxu0
        %v508 = vadd.f32 %v391, %v507
        %v509 = vpop.f32.mrb[0].mxu0
        %v510 = vpop.f32.mrb[0].mxu0
        %v511 = vadd.f32 %v391, %v510
        %v512 = vpop.f32.mrb[0].mxu0
        %513 = vmatprep.mubr.bf16.mxu0 0
        %514 = vmatmul.mubr.bf16.gmra.mrb[0].mxu0 %v411
        %v515 = vpop.f32.mrb[0].mxu0
        %v516 = vadd.f32 %v391, %v515
        %v517 = vpop.f32.mrb[0].mxu0
        %v518 = vpop.f32.mrb[0].mxu0
        %v519 = vadd.f32 %v391, %v518
        %v520 = vpop.f32.mrb[0].mxu0
        %521 = vmatprep.mubr.bf16.mxu0 0
        %522 = vmatmul.mubr.bf16.gmra.mrb[0].mxu0 %v412
        %v523 = vpop.f32.mrb[0].mxu0
        %v524 = vadd.f32 %v391, %v523
        %v525 = vpop.f32.mrb[0].mxu0
        %v526 = vpop.f32.mrb[0].mxu0
        %v527 = vadd.f32 %v391, %v526
        %v528 = vpop.f32.mrb[0].mxu0
        %529 = vdwg.mxu0
        %v530 = vmax.f32 %v500, 0.0
        %v531 = vmax.f32 %v503, 0.0
        %v532 = vmax.f32 %v508, 0.0
        %v533 = vmax.f32 %v511, 0.0
        %v534 = vmax.f32 %v516, 0.0
        %v535 = vmax.f32 %v519, 0.0
        %v536 = vmax.f32 %v524, 0.0
        %v537 = vmax.f32 %v527, 0.0
        %538 = vst [vmem:[#allocation2] sm:$0xff] 0.0
        %539 = vst [vmem:[#allocation2 + $0x8] sm:$0xff] 0.0
        %540 = vst [vmem:[#allocation2 + $0x10] sm:$0xff] 0.0
        %541 = vst [vmem:[#allocation2 + $0x18] sm:$0xff] 0.0
        %542 = vst [vmem:[#allocation2 + $0x20] sm:$0xff] 0.0
        %543 = vst [vmem:[#allocation2 + $0x28] sm:$0xff] 0.0
        %544 = vst [vmem:[#allocation2 + $0x30] sm:$0xff] 0.0
        %545 = vst [vmem:[#allocation2 + $0x38] sm:$0xff] 0.0
        %546 = vst [vmem:[#allocation2 + $0x40] sm:$0xff] 0.0
        %547 = vst [vmem:[#allocation2 + $0x48] sm:$0xff] 0.0
        %548 = vst [vmem:[#allocation2 + $0x50] sm:$0xff] 0.0
        %549 = vst [vmem:[#allocation2 + $0x58] sm:$0xff] 0.0
        %550 = vst [vmem:[#allocation2 + $0x10] sm:$0xff] %v530
        %551 = vst [vmem:[#allocation2 + $0x18] sm:$0xff] %v531
        %552 = vst [vmem:[#allocation2 + $0x20] sm:$0xff] %v532
        %553 = vst [vmem:[#allocation2 + $0x28] sm:$0xff] %v533
        %554 = vst [vmem:[#allocation2 + $0x30] sm:$0xff] %v534
        %555 = vst [vmem:[#allocation2 + $0x38] sm:$0xff] %v535
        %556 = vst [vmem:[#allocation2 + $0x40] sm:$0xff] %v536
        %557 = vst [vmem:[#allocation2 + $0x48] sm:$0xff] %v537
        %v558 = vld [vmem:[%s4] sm:$0x1]
        %v559 = vld [vmem:[#allocation2 + $0x7] sm:$0xff]
        %v560 = vld [vmem:[#allocation2 + $0xf] sm:$0xff]
        %v561 = vld [vmem:[#allocation2 + $0x17] sm:$0xff]
        %v562 = vld [vmem:[#allocation2 + $0x1f] sm:$0xff]
        %v563 = vld [vmem:[#allocation2 + $0x27] sm:$0xff]
        %v564 = vld [vmem:[#allocation2 + $0x2f] sm:$0xff]
        %v565 = vld [vmem:[#allocation2 + $0x37] sm:$0xff]
        %v566 = vld [vmem:[#allocation2 + $0x3f] sm:$0xff]
        %v567 = vld [vmem:[%s7] sm:$0xff]
        %v568 = vld [vmem:[%s7 + $0x8] sm:$0xff]
        %v569 = vld [vmem:[%s7 + $0x10] sm:$0xff]
        %v570 = vld [vmem:[%s7 + $0x18] sm:$0xff]
        %v571 = vld [vmem:[%s7 + $0x20] sm:$0xff]
        %v572 = vld [vmem:[%s7 + $0x28] sm:$0xff]
        %v573 = vld [vmem:[%s7 + $0x30] sm:$0xff]
        %v574 = vld [vmem:[%s7 + $0x38] sm:$0xff]
        %576 = vset.pattern.permute.xlu0 0
        %577 = vperm.xlu0 %576, %v567
        %v578 = vpop.permute.xlu0 %577
        %581 = vset.pattern.permute.xlu0 0
        %582 = vperm.xlu0 %581, %v568
        %v583 = vpop.permute.xlu0 %582
        %586 = vset.pattern.permute.xlu0 0
        %587 = vperm.xlu0 %586, %v569
        %v588 = vpop.permute.xlu0 %587
        %591 = vset.pattern.permute.xlu0 0
        %592 = vperm.xlu0 %591, %v570
        %v593 = vpop.permute.xlu0 %592
        %596 = vset.pattern.permute.xlu0 0
        %597 = vperm.xlu0 %596, %v571
        %v598 = vpop.permute.xlu0 %597
        %601 = vset.pattern.permute.xlu0 0
        %602 = vperm.xlu0 %601, %v572
        %v603 = vpop.permute.xlu0 %602
        %606 = vset.pattern.permute.xlu0 0
        %607 = vperm.xlu0 %606, %v573
        %v608 = vpop.permute.xlu0 %607
        %611 = vset.pattern.permute.xlu0 0
        %612 = vperm.xlu0 %611, %v574
        %v613 = vpop.permute.xlu0 %612
        %v615 = vmul.f32 %v559, %v578
        %v616 = vmul.f32 %v560, %v583
        %v617 = vmul.f32 %v561, %v588
        %v618 = vmul.f32 %v562, %v593
        %v619 = vmul.f32 %v563, %v598
        %v620 = vmul.f32 %v564, %v603
        %v621 = vmul.f32 %v565, %v608
        %v622 = vmul.f32 %v566, %v613
        %v623 = vpack.c.bf16 %v616, %v615
        %v624 = vpack.c.bf16 %v618, %v617
        %v625 = vpack.c.bf16 %v620, %v619
        %v626 = vpack.c.bf16 %v622, %v621
        %v627 = vld [vmem:[#allocation3] sm:$0xf]
        %v628 = vld [vmem:[#allocation3 + $0x4] sm:$0xf]
        %v629 = vld [vmem:[#allocation3 + $0x8] sm:$0xf]
        %v630 = vld [vmem:[#allocation3 + $0xc] sm:$0xf]
        %v631 = vld [vmem:[#allocation3 + $0x10] sm:$0xf]
        %v632 = vld [vmem:[#allocation3 + $0x14] sm:$0xf]
        %v633 = vld [vmem:[#allocation3 + $0x18] sm:$0xf]
        %v634 = vld [vmem:[#allocation3 + $0x1c] sm:$0xf]
        %v635 = vld [vmem:[#allocation3 + $0x20] sm:$0xf]
        %v636 = vld [vmem:[#allocation3 + $0x24] sm:$0xf]
        %v637 = vld [vmem:[#allocation3 + $0x28] sm:$0xf]
        %v638 = vld [vmem:[#allocation3 + $0x2c] sm:$0xf]
        %v639 = vld [vmem:[#allocation3 + $0x30] sm:$0xf]
        %v640 = vld [vmem:[#allocation3 + $0x34] sm:$0xf]
        %v641 = vld [vmem:[#allocation3 + $0x38] sm:$0xf]
        %v642 = vld [vmem:[#allocation3 + $0x3c] sm:$0xf]
        %v659 = vunpack.c.l.b16 %v627
        %v660 = vunpack.c.l.b16 %v628
        %v661 = vunpack.c.l.b16 %v629
        %v662 = vunpack.c.l.b16 %v630
        %v663 = vunpack.c.l.b16 %v631
        %v664 = vunpack.c.l.b16 %v632
        %v665 = vunpack.c.l.b16 %v633
        %v666 = vunpack.c.l.b16 %v634
        %v667 = vunpack.c.l.b16 %v635
        %v668 = vunpack.c.l.b16 %v636
        %v669 = vunpack.c.l.b16 %v637
        %v670 = vunpack.c.l.b16 %v638
        %v671 = vunpack.c.l.b16 %v639
        %v672 = vunpack.c.l.b16 %v640
        %v673 = vunpack.c.l.b16 %v641
        %v674 = vunpack.c.l.b16 %v642
        %v675 = vpack.c.b16 %v660, %v659
        %v676 = vpack.c.b16 %v662, %v661
        %v677 = vpack.c.b16 %v664, %v663
        %v678 = vpack.c.b16 %v666, %v665
        %v679 = vpack.c.b16 %v668, %v667
        %v680 = vpack.c.b16 %v670, %v669
        %v681 = vpack.c.b16 %v672, %v671
        %v682 = vpack.c.b16 %v674, %v673
        %691 = vmatprep.subr.bf16.mxu0 0
        %692 = vmatpush1.bf16.msra.mxu0 %v675
        %693 = vmatprep.subr.bf16.mxu0 0
        %694 = vmatpush1.bf16.msra.mxu0 %v676
        %695 = vmatprep.subr.bf16.mxu0 0
        %696 = vmatpush1.bf16.msra.mxu0 %v677
        %697 = vmatprep.subr.bf16.mxu0 0
        %698 = vmatpush1.bf16.msra.mxu0 %v678
        %699 = vmatprep.subr.bf16.mxu0 0
        %700 = vmatpush1.bf16.msra.mxu0 %v679
        %701 = vmatprep.subr.bf16.mxu0 0
        %702 = vmatpush1.bf16.msra.mxu0 %v680
        %703 = vmatprep.subr.bf16.mxu0 0
        %704 = vmatpush1.bf16.msra.mxu0 %v681
        %705 = vmatprep.subr.bf16.mxu0 0
        %706 = vmatpush1.bf16.msra.mxu0 %v682
        %707 = vmatprep.subr.bf16.mxu0 0
        %708 = vmatpush1.bf16.msra.mxu0 0
        %709 = vmatprep.subr.bf16.mxu0 0
        %710 = vmatpush1.bf16.msra.mxu0 0
        %711 = vmatprep.subr.bf16.mxu0 0
        %712 = vmatpush1.bf16.msra.mxu0 0
        %713 = vmatprep.subr.bf16.mxu0 0
        %714 = vmatpush1.bf16.msra.mxu0 0
        %715 = vmatprep.subr.bf16.mxu0 0
        %716 = vmatpush1.bf16.msra.mxu0 0
        %717 = vmatprep.subr.bf16.mxu0 0
        %718 = vmatpush1.bf16.msra.mxu0 0
        %719 = vmatprep.subr.bf16.mxu0 0
        %720 = vmatpush1.bf16.msra.mxu0 0
        %721 = vmatprep.subr.bf16.mxu0 0
        %722 = vmatpush1.bf16.msra.mxu0 0
        %723 = vmatprep.mubr.bf16.mxu0 0
        %724 = vmatmul.mubr.bf16.gmra.mrb[0].mxu0 %v623
        %v725 = vpop.f32.mrb[0].mxu0
        %v726 = vadd.f32 0.0, %v725
        %v727 = vpop.f32.mrb[0].mxu0
        %v728 = vpop.f32.mrb[0].mxu0
        %v729 = vadd.f32 0.0, %v728
        %v730 = vpop.f32.mrb[0].mxu0
        %731 = vmatprep.mubr.bf16.mxu0 0
        %732 = vmatmul.mubr.bf16.gmra.mrb[0].mxu0 %v624
        %v733 = vpop.f32.mrb[0].mxu0
        %v734 = vadd.f32 0.0, %v733
        %v735 = vpop.f32.mrb[0].mxu0
        %v736 = vpop.f32.mrb[0].mxu0
        %v737 = vadd.f32 0.0, %v736
        %v738 = vpop.f32.mrb[0].mxu0
        %739 = vmatprep.mubr.bf16.mxu0 0
        %740 = vmatmul.mubr.bf16.gmra.mrb[0].mxu0 %v625
        %v741 = vpop.f32.mrb[0].mxu0
        %v742 = vadd.f32 0.0, %v741
        %v743 = vpop.f32.mrb[0].mxu0
        %v744 = vpop.f32.mrb[0].mxu0
        %v745 = vadd.f32 0.0, %v744
        %v746 = vpop.f32.mrb[0].mxu0
        %747 = vmatprep.mubr.bf16.mxu0 0
        %748 = vmatmul.mubr.bf16.gmra.mrb[0].mxu0 %v626
        %v749 = vpop.f32.mrb[0].mxu0
        %v750 = vadd.f32 0.0, %v749
        %v751 = vpop.f32.mrb[0].mxu0
        %v752 = vpop.f32.mrb[0].mxu0
        %v753 = vadd.f32 0.0, %v752
        %v754 = vpop.f32.mrb[0].mxu0
        %755 = vdwg.mxu0
        %v757 = vlaneseq
        %v758 = vshrl.u32 %v757, 7
        %v759 = vsub.s32 0, %v758
        %v760 = vrot.slane %v558, %v759
        %v762 = vadd.f32 %v760, %v726
        %v763 = vadd.f32 %v760, %v729
        %v764 = vadd.f32 %v760, %v734
        %v765 = vadd.f32 %v760, %v737
        %v766 = vadd.f32 %v760, %v742
        %v767 = vadd.f32 %v760, %v745
        %v768 = vadd.f32 %v760, %v750
        %v769 = vadd.f32 %v760, %v753
        %v770 = vld [vmem:[#allocation2 + $0x8] sm:$0xff]
        %v771 = vld [vmem:[#allocation2 + $0x10] sm:$0xff]
        %v772 = vld [vmem:[#allocation2 + $0x18] sm:$0xff]
        %v773 = vld [vmem:[#allocation2 + $0x20] sm:$0xff]
        %v774 = vld [vmem:[#allocation2 + $0x28] sm:$0xff]
        %v775 = vld [vmem:[#allocation2 + $0x30] sm:$0xff]
        %v776 = vld [vmem:[#allocation2 + $0x38] sm:$0xff]
        %v777 = vld [vmem:[#allocation2 + $0x40] sm:$0xff]
        %v778 = vpack.c.bf16 %v771, %v770
        %v779 = vpack.c.bf16 %v773, %v772
        %v780 = vpack.c.bf16 %v775, %v774
        %v781 = vpack.c.bf16 %v777, %v776
        %s782 = scalar_lea.vmem [#allocation3], 64
        %v783 = vld [vmem:[%s782] sm:$0xf]
        %v784 = vld [vmem:[%s782 + $0x4] sm:$0xf]
        %v785 = vld [vmem:[%s782 + $0x8] sm:$0xf]
        %v786 = vld [vmem:[%s782 + $0xc] sm:$0xf]
        %v787 = vld [vmem:[%s782 + $0x10] sm:$0xf]
        %v788 = vld [vmem:[%s782 + $0x14] sm:$0xf]
        %v789 = vld [vmem:[%s782 + $0x18] sm:$0xf]
        %v790 = vld [vmem:[%s782 + $0x1c] sm:$0xf]
        %v791 = vld [vmem:[%s782 + $0x20] sm:$0xf]
        %v792 = vld [vmem:[%s782 + $0x24] sm:$0xf]
        %v793 = vld [vmem:[%s782 + $0x28] sm:$0xf]
        %v794 = vld [vmem:[%s782 + $0x2c] sm:$0xf]
        %v795 = vld [vmem:[%s782 + $0x30] sm:$0xf]
        %v796 = vld [vmem:[%s782 + $0x34] sm:$0xf]
        %v797 = vld [vmem:[%s782 + $0x38] sm:$0xf]
        %v798 = vld [vmem:[%s782 + $0x3c] sm:$0xf]
        %v815 = vunpack.c.l.b16 %v783
        %v816 = vunpack.c.l.b16 %v784
        %v817 = vunpack.c.l.b16 %v785
        %v818 = vunpack.c.l.b16 %v786
        %v819 = vunpack.c.l.b16 %v787
        %v820 = vunpack.c.l.b16 %v788
        %v821 = vunpack.c.l.b16 %v789
        %v822 = vunpack.c.l.b16 %v790
        %v823 = vunpack.c.l.b16 %v791
        %v824 = vunpack.c.l.b16 %v792
        %v825 = vunpack.c.l.b16 %v793
        %v826 = vunpack.c.l.b16 %v794
        %v827 = vunpack.c.l.b16 %v795
        %v828 = vunpack.c.l.b16 %v796
        %v829 = vunpack.c.l.b16 %v797
        %v830 = vunpack.c.l.b16 %v798
        %v831 = vpack.c.b16 %v816, %v815
        %v832 = vpack.c.b16 %v818, %v817
        %v833 = vpack.c.b16 %v820, %v819
        %v834 = vpack.c.b16 %v822, %v821
        %v835 = vpack.c.b16 %v824, %v823
        %v836 = vpack.c.b16 %v826, %v825
        %v837 = vpack.c.b16 %v828, %v827
        %v838 = vpack.c.b16 %v830, %v829
        %847 = vmatprep.subr.bf16.mxu0 0
        %848 = vmatpush1.bf16.msra.mxu0 %v831
        %849 = vmatprep.subr.bf16.mxu0 0
        %850 = vmatpush1.bf16.msra.mxu0 %v832
        %851 = vmatprep.subr.bf16.mxu0 0
        %852 = vmatpush1.bf16.msra.mxu0 %v833
        %853 = vmatprep.subr.bf16.mxu0 0
        %854 = vmatpush1.bf16.msra.mxu0 %v834
        %855 = vmatprep.subr.bf16.mxu0 0
        %856 = vmatpush1.bf16.msra.mxu0 %v835
        %857 = vmatprep.subr.bf16.mxu0 0
        %858 = vmatpush1.bf16.msra.mxu0 %v836
        %859 = vmatprep.subr.bf16.mxu0 0
        %860 = vmatpush1.bf16.msra.mxu0 %v837
        %861 = vmatprep.subr.bf16.mxu0 0
        %862 = vmatpush1.bf16.msra.mxu0 %v838
        %863 = vmatprep.subr.bf16.mxu0 0
        %864 = vmatpush1.bf16.msra.mxu0 0
        %865 = vmatprep.subr.bf16.mxu0 0
        %866 = vmatpush1.bf16.msra.mxu0 0
        %867 = vmatprep.subr.bf16.mxu0 0
        %868 = vmatpush1.bf16.msra.mxu0 0
        %869 = vmatprep.subr.bf16.mxu0 0
        %870 = vmatpush1.bf16.msra.mxu0 0
        %871 = vmatprep.subr.bf16.mxu0 0
        %872 = vmatpush1.bf16.msra.mxu0 0
        %873 = vmatprep.subr.bf16.mxu0 0
        %874 = vmatpush1.bf16.msra.mxu0 0
        %875 = vmatprep.subr.bf16.mxu0 0
        %876 = vmatpush1.bf16.msra.mxu0 0
        %877 = vmatprep.subr.bf16.mxu0 0
        %878 = vmatpush1.bf16.msra.mxu0 0
        %879 = vmatprep.mubr.bf16.mxu0 0
        %880 = vmatmul.mubr.bf16.gmra.mrb[0].mxu0 %v778
        %v881 = vpop.f32.mrb[0].mxu0
        %v882 = vadd.f32 0.0, %v881
        %v883 = vpop.f32.mrb[0].mxu0
        %v884 = vpop.f32.mrb[0].mxu0
        %v885 = vadd.f32 0.0, %v884
        %v886 = vpop.f32.mrb[0].mxu0
        %887 = vmatprep.mubr.bf16.mxu0 0
        %888 = vmatmul.mubr.bf16.gmra.mrb[0].mxu0 %v779
        %v889 = vpop.f32.mrb[0].mxu0
        %v890 = vadd.f32 0.0, %v889
        %v891 = vpop.f32.mrb[0].mxu0
        %v892 = vpop.f32.mrb[0].mxu0
        %v893 = vadd.f32 0.0, %v892
        %v894 = vpop.f32.mrb[0].mxu0
        %895 = vmatprep.mubr.bf16.mxu0 0
        %896 = vmatmul.mubr.bf16.gmra.mrb[0].mxu0 %v780
        %v897 = vpop.f32.mrb[0].mxu0
        %v898 = vadd.f32 0.0, %v897
        %v899 = vpop.f32.mrb[0].mxu0
        %v900 = vpop.f32.mrb[0].mxu0
        %v901 = vadd.f32 0.0, %v900
        %v902 = vpop.f32.mrb[0].mxu0
        %903 = vmatprep.mubr.bf16.mxu0 0
        %904 = vmatmul.mubr.bf16.gmra.mrb[0].mxu0 %v781
        %v905 = vpop.f32.mrb[0].mxu0
        %v906 = vadd.f32 0.0, %v905
        %v907 = vpop.f32.mrb[0].mxu0
        %v908 = vpop.f32.mrb[0].mxu0
        %v909 = vadd.f32 0.0, %v908
        %v910 = vpop.f32.mrb[0].mxu0
        %911 = vdwg.mxu0
        %v912 = vadd.f32 %v762, %v882
        %v913 = vadd.f32 %v763, %v885
        %v914 = vadd.f32 %v764, %v890
        %v915 = vadd.f32 %v765, %v893
        %v916 = vadd.f32 %v766, %v898
        %v917 = vadd.f32 %v767, %v901
        %v918 = vadd.f32 %v768, %v906
        %v919 = vadd.f32 %v769, %v909
        %v920 = vld [vmem:[#allocation2 + $0x9] sm:$0xff]
        %v921 = vld [vmem:[#allocation2 + $0x11] sm:$0xff]
        %v922 = vld [vmem:[#allocation2 + $0x19] sm:$0xff]
        %v923 = vld [vmem:[#allocation2 + $0x21] sm:$0xff]
        %v924 = vld [vmem:[#allocation2 + $0x29] sm:$0xff]
        %v925 = vld [vmem:[#allocation2 + $0x31] sm:$0xff]
        %v926 = vld [vmem:[#allocation2 + $0x39] sm:$0xff]
        %v927 = vld [vmem:[#allocation2 + $0x41] sm:$0xff]
        %v928 = vld [vmem:[%s8] sm:$0xff]
        %v929 = vld [vmem:[%s8 + $0x8] sm:$0xff]
        %v930 = vld [vmem:[%s8 + $0x10] sm:$0xff]
        %v931 = vld [vmem:[%s8 + $0x18] sm:$0xff]
        %v932 = vld [vmem:[%s8 + $0x20] sm:$0xff]
        %v933 = vld [vmem:[%s8 + $0x28] sm:$0xff]
        %v934 = vld [vmem:[%s8 + $0x30] sm:$0xff]
        %v935 = vld [vmem:[%s8 + $0x38] sm:$0xff]
        %937 = vset.pattern.permute.xlu0 0
        %938 = vperm.xlu0 %937, %v928
        %v939 = vpop.permute.xlu0 %938
        %942 = vset.pattern.permute.xlu0 0
        %943 = vperm.xlu0 %942, %v929
        %v944 = vpop.permute.xlu0 %943
        %947 = vset.pattern.permute.xlu0 0
        %948 = vperm.xlu0 %947, %v930
        %v949 = vpop.permute.xlu0 %948
        %952 = vset.pattern.permute.xlu0 0
        %953 = vperm.xlu0 %952, %v931
        %v954 = vpop.permute.xlu0 %953
        %957 = vset.pattern.permute.xlu0 0
        %958 = vperm.xlu0 %957, %v932
        %v959 = vpop.permute.xlu0 %958
        %962 = vset.pattern.permute.xlu0 0
        %963 = vperm.xlu0 %962, %v933
        %v964 = vpop.permute.xlu0 %963
        %967 = vset.pattern.permute.xlu0 0
        %968 = vperm.xlu0 %967, %v934
        %v969 = vpop.permute.xlu0 %968
        %972 = vset.pattern.permute.xlu0 0
        %973 = vperm.xlu0 %972, %v935
        %v974 = vpop.permute.xlu0 %973
        %v976 = vmul.f32 %v920, %v939
        %v977 = vmul.f32 %v921, %v944
        %v978 = vmul.f32 %v922, %v949
        %v979 = vmul.f32 %v923, %v954
        %v980 = vmul.f32 %v924, %v959
        %v981 = vmul.f32 %v925, %v964
        %v982 = vmul.f32 %v926, %v969
        %v983 = vmul.f32 %v927, %v974
        %v984 = vpack.c.bf16 %v977, %v976
        %v985 = vpack.c.bf16 %v979, %v978
        %v986 = vpack.c.bf16 %v981, %v980
        %v987 = vpack.c.bf16 %v983, %v982
        %s988 = scalar_lea.vmem [#allocation3], 128
        %v989 = vld [vmem:[%s988] sm:$0xf]
        %v990 = vld [vmem:[%s988 + $0x4] sm:$0xf]
        %v991 = vld [vmem:[%s988 + $0x8] sm:$0xf]
        %v992 = vld [vmem:[%s988 + $0xc] sm:$0xf]
        %v993 = vld [vmem:[%s988 + $0x10] sm:$0xf]
        %v994 = vld [vmem:[%s988 + $0x14] sm:$0xf]
        %v995 = vld [vmem:[%s988 + $0x18] sm:$0xf]
        %v996 = vld [vmem:[%s988 + $0x1c] sm:$0xf]
        %v997 = vld [vmem:[%s988 + $0x20] sm:$0xf]
        %v998 = vld [vmem:[%s988 + $0x24] sm:$0xf]
        %v999 = vld [vmem:[%s988 + $0x28] sm:$0xf]
        %v1000 = vld [vmem:[%s988 + $0x2c] sm:$0xf]
        %v1001 = vld [vmem:[%s988 + $0x30] sm:$0xf]
        %v1002 = vld [vmem:[%s988 + $0x34] sm:$0xf]
        %v1003 = vld [vmem:[%s988 + $0x38] sm:$0xf]
        %v1004 = vld [vmem:[%s988 + $0x3c] sm:$0xf]
        %v1021 = vunpack.c.l.b16 %v989
        %v1022 = vunpack.c.l.b16 %v990
        %v1023 = vunpack.c.l.b16 %v991
        %v1024 = vunpack.c.l.b16 %v992
        %v1025 = vunpack.c.l.b16 %v993
        %v1026 = vunpack.c.l.b16 %v994
        %v1027 = vunpack.c.l.b16 %v995
        %v1028 = vunpack.c.l.b16 %v996
        %v1029 = vunpack.c.l.b16 %v997
        %v1030 = vunpack.c.l.b16 %v998
        %v1031 = vunpack.c.l.b16 %v999
        %v1032 = vunpack.c.l.b16 %v1000
        %v1033 = vunpack.c.l.b16 %v1001
        %v1034 = vunpack.c.l.b16 %v1002
        %v1035 = vunpack.c.l.b16 %v1003
        %v1036 = vunpack.c.l.b16 %v1004
        %v1037 = vpack.c.b16 %v1022, %v1021
        %v1038 = vpack.c.b16 %v1024, %v1023
        %v1039 = vpack.c.b16 %v1026, %v1025
        %v1040 = vpack.c.b16 %v1028, %v1027
        %v1041 = vpack.c.b16 %v1030, %v1029
        %v1042 = vpack.c.b16 %v1032, %v1031
        %v1043 = vpack.c.b16 %v1034, %v1033
        %v1044 = vpack.c.b16 %v1036, %v1035
        %1053 = vmatprep.subr.bf16.mxu0 0
        %1054 = vmatpush1.bf16.msra.mxu0 %v1037
        %1055 = vmatprep.subr.bf16.mxu0 0
        %1056 = vmatpush1.bf16.msra.mxu0 %v1038
        %1057 = vmatprep.subr.bf16.mxu0 0
        %1058 = vmatpush1.bf16.msra.mxu0 %v1039
        %1059 = vmatprep.subr.bf16.mxu0 0
        %1060 = vmatpush1.bf16.msra.mxu0 %v1040
        %1061 = vmatprep.subr.bf16.mxu0 0
        %1062 = vmatpush1.bf16.msra.mxu0 %v1041
        %1063 = vmatprep.subr.bf16.mxu0 0
        %1064 = vmatpush1.bf16.msra.mxu0 %v1042
        %1065 = vmatprep.subr.bf16.mxu0 0
        %1066 = vmatpush1.bf16.msra.mxu0 %v1043
        %1067 = vmatprep.subr.bf16.mxu0 0
        %1068 = vmatpush1.bf16.msra.mxu0 %v1044
        %1069 = vmatprep.subr.bf16.mxu0 0
        %1070 = vmatpush1.bf16.msra.mxu0 0
        %1071 = vmatprep.subr.bf16.mxu0 0
        %1072 = vmatpush1.bf16.msra.mxu0 0
        %1073 = vmatprep.subr.bf16.mxu0 0
        %1074 = vmatpush1.bf16.msra.mxu0 0
        %1075 = vmatprep.subr.bf16.mxu0 0
        %1076 = vmatpush1.bf16.msra.mxu0 0
        %1077 = vmatprep.subr.bf16.mxu0 0
        %1078 = vmatpush1.bf16.msra.mxu0 0
        %1079 = vmatprep.subr.bf16.mxu0 0
        %1080 = vmatpush1.bf16.msra.mxu0 0
        %1081 = vmatprep.subr.bf16.mxu0 0
        %1082 = vmatpush1.bf16.msra.mxu0 0
        %1083 = vmatprep.subr.bf16.mxu0 0
        %1084 = vmatpush1.bf16.msra.mxu0 0
        %1085 = vmatprep.mubr.bf16.mxu0 0
        %1086 = vmatmul.mubr.bf16.gmra.mrb[0].mxu0 %v984
        %v1087 = vpop.f32.mrb[0].mxu0
        %v1088 = vadd.f32 0.0, %v1087
        %v1089 = vpop.f32.mrb[0].mxu0
        %v1090 = vpop.f32.mrb[0].mxu0
        %v1091 = vadd.f32 0.0, %v1090
        %v1092 = vpop.f32.mrb[0].mxu0
        %1093 = vmatprep.mubr.bf16.mxu0 0
        %1094 = vmatmul.mubr.bf16.gmra.mrb[0].mxu0 %v985
        %v1095 = vpop.f32.mrb[0].mxu0
        %v1096 = vadd.f32 0.0, %v1095
        %v1097 = vpop.f32.mrb[0].mxu0
        %v1098 = vpop.f32.mrb[0].mxu0
        %v1099 = vadd.f32 0.0, %v1098
        %v1100 = vpop.f32.mrb[0].mxu0
        %1101 = vmatprep.mubr.bf16.mxu0 0
        %1102 = vmatmul.mubr.bf16.gmra.mrb[0].mxu0 %v986
        %v1103 = vpop.f32.mrb[0].mxu0
        %v1104 = vadd.f32 0.0, %v1103
        %v1105 = vpop.f32.mrb[0].mxu0
        %v1106 = vpop.f32.mrb[0].mxu0
        %v1107 = vadd.f32 0.0, %v1106
        %v1108 = vpop.f32.mrb[0].mxu0
        %1109 = vmatprep.mubr.bf16.mxu0 0
        %1110 = vmatmul.mubr.bf16.gmra.mrb[0].mxu0 %v987
        %v1111 = vpop.f32.mrb[0].mxu0
        %v1112 = vadd.f32 0.0, %v1111
        %v1113 = vpop.f32.mrb[0].mxu0
        %v1114 = vpop.f32.mrb[0].mxu0
        %v1115 = vadd.f32 0.0, %v1114
        %v1116 = vpop.f32.mrb[0].mxu0
        %1117 = vdwg.mxu0
        %v1118 = vadd.f32 %v912, %v1088
        %v1119 = vadd.f32 %v913, %v1091
        %v1120 = vadd.f32 %v914, %v1096
        %v1121 = vadd.f32 %v915, %v1099
        %v1122 = vadd.f32 %v916, %v1104
        %v1123 = vadd.f32 %v917, %v1107
        %v1124 = vadd.f32 %v918, %v1112
        %v1125 = vadd.f32 %v919, %v1115
        %v1126 = vld [vmem:[#allocation2 + $0xf] sm:$0xff]
        %v1127 = vld [vmem:[#allocation2 + $0x17] sm:$0xff]
        %v1128 = vld [vmem:[#allocation2 + $0x1f] sm:$0xff]
        %v1129 = vld [vmem:[#allocation2 + $0x27] sm:$0xff]
        %v1130 = vld [vmem:[#allocation2 + $0x2f] sm:$0xff]
        %v1131 = vld [vmem:[#allocation2 + $0x37] sm:$0xff]
        %v1132 = vld [vmem:[#allocation2 + $0x3f] sm:$0xff]
        %v1133 = vld [vmem:[#allocation2 + $0x47] sm:$0xff]
        %v1134 = vmul.f32 %v1126, %v578
        %v1135 = vmul.f32 %v1127, %v583
        %v1136 = vmul.f32 %v1128, %v588
        %v1137 = vmul.f32 %v1129, %v593
        %v1138 = vmul.f32 %v1130, %v598
        %v1139 = vmul.f32 %v1131, %v603
        %v1140 = vmul.f32 %v1132, %v608
        %v1141 = vmul.f32 %v1133, %v613
        %v1142 = vpack.c.bf16 %v1135, %v1134
        %v1143 = vpack.c.bf16 %v1137, %v1136
        %v1144 = vpack.c.bf16 %v1139, %v1138
        %v1145 = vpack.c.bf16 %v1141, %v1140
        %s1146 = scalar_lea.vmem [#allocation3], 192
        %v1147 = vld [vmem:[%s1146] sm:$0xf]
        %v1148 = vld [vmem:[%s1146 + $0x4] sm:$0xf]
        %v1149 = vld [vmem:[%s1146 + $0x8] sm:$0xf]
        %v1150 = vld [vmem:[%s1146 + $0xc] sm:$0xf]
        %v1151 = vld [vmem:[%s1146 + $0x10] sm:$0xf]
        %v1152 = vld [vmem:[%s1146 + $0x14] sm:$0xf]
        %v1153 = vld [vmem:[%s1146 + $0x18] sm:$0xf]
        %v1154 = vld [vmem:[%s1146 + $0x1c] sm:$0xf]
        %v1155 = vld [vmem:[%s1146 + $0x20] sm:$0xf]
        %v1156 = vld [vmem:[%s1146 + $0x24] sm:$0xf]
        %v1157 = vld [vmem:[%s1146 + $0x28] sm:$0xf]
        %v1158 = vld [vmem:[%s1146 + $0x2c] sm:$0xf]
        %v1159 = vld [vmem:[%s1146 + $0x30] sm:$0xf]
        %v1160 = vld [vmem:[%s1146 + $0x34] sm:$0xf]
        %v1161 = vld [vmem:[%s1146 + $0x38] sm:$0xf]
        %v1162 = vld [vmem:[%s1146 + $0x3c] sm:$0xf]
        %v1179 = vunpack.c.l.b16 %v1147
        %v1180 = vunpack.c.l.b16 %v1148
        %v1181 = vunpack.c.l.b16 %v1149
        %v1182 = vunpack.c.l.b16 %v1150
        %v1183 = vunpack.c.l.b16 %v1151
        %v1184 = vunpack.c.l.b16 %v1152
        %v1185 = vunpack.c.l.b16 %v1153
        %v1186 = vunpack.c.l.b16 %v1154
        %v1187 = vunpack.c.l.b16 %v1155
        %v1188 = vunpack.c.l.b16 %v1156
        %v1189 = vunpack.c.l.b16 %v1157
        %v1190 = vunpack.c.l.b16 %v1158
        %v1191 = vunpack.c.l.b16 %v1159
        %v1192 = vunpack.c.l.b16 %v1160
        %v1193 = vunpack.c.l.b16 %v1161
        %v1194 = vunpack.c.l.b16 %v1162
        %v1195 = vpack.c.b16 %v1180, %v1179
        %v1196 = vpack.c.b16 %v1182, %v1181
        %v1197 = vpack.c.b16 %v1184, %v1183
        %v1198 = vpack.c.b16 %v1186, %v1185
        %v1199 = vpack.c.b16 %v1188, %v1187
        %v1200 = vpack.c.b16 %v1190, %v1189
        %v1201 = vpack.c.b16 %v1192, %v1191
        %v1202 = vpack.c.b16 %v1194, %v1193
        %1211 = vmatprep.subr.bf16.mxu0 0
        %1212 = vmatpush1.bf16.msra.mxu0 %v1195
        %1213 = vmatprep.subr.bf16.mxu0 0
        %1214 = vmatpush1.bf16.msra.mxu0 %v1196
        %1215 = vmatprep.subr.bf16.mxu0 0
        %1216 = vmatpush1.bf16.msra.mxu0 %v1197
        %1217 = vmatprep.subr.bf16.mxu0 0
        %1218 = vmatpush1.bf16.msra.mxu0 %v1198
        %1219 = vmatprep.subr.bf16.mxu0 0
        %1220 = vmatpush1.bf16.msra.mxu0 %v1199
        %1221 = vmatprep.subr.bf16.mxu0 0
        %1222 = vmatpush1.bf16.msra.mxu0 %v1200
        %1223 = vmatprep.subr.bf16.mxu0 0
        %1224 = vmatpush1.bf16.msra.mxu0 %v1201
        %1225 = vmatprep.subr.bf16.mxu0 0
        %1226 = vmatpush1.bf16.msra.mxu0 %v1202
        %1227 = vmatprep.subr.bf16.mxu0 0
        %1228 = vmatpush1.bf16.msra.mxu0 0
        %1229 = vmatprep.subr.bf16.mxu0 0
        %1230 = vmatpush1.bf16.msra.mxu0 0
        %1231 = vmatprep.subr.bf16.mxu0 0
        %1232 = vmatpush1.bf16.msra.mxu0 0
        %1233 = vmatprep.subr.bf16.mxu0 0
        %1234 = vmatpush1.bf16.msra.mxu0 0
        %1235 = vmatprep.subr.bf16.mxu0 0
        %1236 = vmatpush1.bf16.msra.mxu0 0
        %1237 = vmatprep.subr.bf16.mxu0 0
        %1238 = vmatpush1.bf16.msra.mxu0 0
        %1239 = vmatprep.subr.bf16.mxu0 0
        %1240 = vmatpush1.bf16.msra.mxu0 0
        %1241 = vmatprep.subr.bf16.mxu0 0
        %1242 = vmatpush1.bf16.msra.mxu0 0
        %1243 = vmatprep.mubr.bf16.mxu0 0
        %1244 = vmatmul.mubr.bf16.gmra.mrb[0].mxu0 %v1142
        %v1245 = vpop.f32.mrb[0].mxu0
        %v1246 = vadd.f32 0.0, %v1245
        %v1247 = vpop.f32.mrb[0].mxu0
        %v1248 = vpop.f32.mrb[0].mxu0
        %v1249 = vadd.f32 0.0, %v1248
        %v1250 = vpop.f32.mrb[0].mxu0
        %1251 = vmatprep.mubr.bf16.mxu0 0
        %1252 = vmatmul.mubr.bf16.gmra.mrb[0].mxu0 %v1143
        %v1253 = vpop.f32.mrb[0].mxu0
        %v1254 = vadd.f32 0.0, %v1253
        %v1255 = vpop.f32.mrb[0].mxu0
        %v1256 = vpop.f32.mrb[0].mxu0
        %v1257 = vadd.f32 0.0, %v1256
        %v1258 = vpop.f32.mrb[0].mxu0
        %1259 = vmatprep.mubr.bf16.mxu0 0
        %1260 = vmatmul.mubr.bf16.gmra.mrb[0].mxu0 %v1144
        %v1261 = vpop.f32.mrb[0].mxu0
        %v1262 = vadd.f32 0.0, %v1261
        %v1263 = vpop.f32.mrb[0].mxu0
        %v1264 = vpop.f32.mrb[0].mxu0
        %v1265 = vadd.f32 0.0, %v1264
        %v1266 = vpop.f32.mrb[0].mxu0
        %1267 = vmatprep.mubr.bf16.mxu0 0
        %1268 = vmatmul.mubr.bf16.gmra.mrb[0].mxu0 %v1145
        %v1269 = vpop.f32.mrb[0].mxu0
        %v1270 = vadd.f32 0.0, %v1269
        %v1271 = vpop.f32.mrb[0].mxu0
        %v1272 = vpop.f32.mrb[0].mxu0
        %v1273 = vadd.f32 0.0, %v1272
        %v1274 = vpop.f32.mrb[0].mxu0
        %1275 = vdwg.mxu0
        %v1276 = vadd.f32 %v1118, %v1246
        %v1277 = vadd.f32 %v1119, %v1249
        %v1278 = vadd.f32 %v1120, %v1254
        %v1279 = vadd.f32 %v1121, %v1257
        %v1280 = vadd.f32 %v1122, %v1262
        %v1281 = vadd.f32 %v1123, %v1265
        %v1282 = vadd.f32 %v1124, %v1270
        %v1283 = vadd.f32 %v1125, %v1273
        %v1284 = vld [vmem:[#allocation2 + $0x10] sm:$0xff]
        %v1285 = vld [vmem:[#allocation2 + $0x18] sm:$0xff]
        %v1286 = vld [vmem:[#allocation2 + $0x20] sm:$0xff]
        %v1287 = vld [vmem:[#allocation2 + $0x28] sm:$0xff]
        %v1288 = vld [vmem:[#allocation2 + $0x30] sm:$0xff]
        %v1289 = vld [vmem:[#allocation2 + $0x38] sm:$0xff]
        %v1290 = vld [vmem:[#allocation2 + $0x40] sm:$0xff]
        %v1291 = vld [vmem:[#allocation2 + $0x48] sm:$0xff]
        %v1292 = vpack.c.bf16 %v1285, %v1284
        %v1293 = vpack.c.bf16 %v1287, %v1286
        %v1294 = vpack.c.bf16 %v1289, %v1288
        %v1295 = vpack.c.bf16 %v1291, %v1290
        %s1296 = scalar_lea.vmem [#allocation3], 256
        %v1297 = vld [vmem:[%s1296] sm:$0xf]
        %v1298 = vld [vmem:[%s1296 + $0x4] sm:$0xf]
        %v1299 = vld [vmem:[%s1296 + $0x8] sm:$0xf]
        %v1300 = vld [vmem:[%s1296 + $0xc] sm:$0xf]
        %v1301 = vld [vmem:[%s1296 + $0x10] sm:$0xf]
        %v1302 = vld [vmem:[%s1296 + $0x14] sm:$0xf]
        %v1303 = vld [vmem:[%s1296 + $0x18] sm:$0xf]
        %v1304 = vld [vmem:[%s1296 + $0x1c] sm:$0xf]
        %v1305 = vld [vmem:[%s1296 + $0x20] sm:$0xf]
        %v1306 = vld [vmem:[%s1296 + $0x24] sm:$0xf]
        %v1307 = vld [vmem:[%s1296 + $0x28] sm:$0xf]
        %v1308 = vld [vmem:[%s1296 + $0x2c] sm:$0xf]
        %v1309 = vld [vmem:[%s1296 + $0x30] sm:$0xf]
        %v1310 = vld [vmem:[%s1296 + $0x34] sm:$0xf]
        %v1311 = vld [vmem:[%s1296 + $0x38] sm:$0xf]
        %v1312 = vld [vmem:[%s1296 + $0x3c] sm:$0xf]
        %v1329 = vunpack.c.l.b16 %v1297
        %v1330 = vunpack.c.l.b16 %v1298
        %v1331 = vunpack.c.l.b16 %v1299
        %v1332 = vunpack.c.l.b16 %v1300
        %v1333 = vunpack.c.l.b16 %v1301
        %v1334 = vunpack.c.l.b16 %v1302
        %v1335 = vunpack.c.l.b16 %v1303
        %v1336 = vunpack.c.l.b16 %v1304
        %v1337 = vunpack.c.l.b16 %v1305
        %v1338 = vunpack.c.l.b16 %v1306
        %v1339 = vunpack.c.l.b16 %v1307
        %v1340 = vunpack.c.l.b16 %v1308
        %v1341 = vunpack.c.l.b16 %v1309
        %v1342 = vunpack.c.l.b16 %v1310
        %v1343 = vunpack.c.l.b16 %v1311
        %v1344 = vunpack.c.l.b16 %v1312
        %v1345 = vpack.c.b16 %v1330, %v1329
        %v1346 = vpack.c.b16 %v1332, %v1331
        %v1347 = vpack.c.b16 %v1334, %v1333
        %v1348 = vpack.c.b16 %v1336, %v1335
        %v1349 = vpack.c.b16 %v1338, %v1337
        %v1350 = vpack.c.b16 %v1340, %v1339
        %v1351 = vpack.c.b16 %v1342, %v1341
        %v1352 = vpack.c.b16 %v1344, %v1343
        %1361 = vmatprep.subr.bf16.mxu0 0
        %1362 = vmatpush1.bf16.msra.mxu0 %v1345
        %1363 = vmatprep.subr.bf16.mxu0 0
        %1364 = vmatpush1.bf16.msra.mxu0 %v1346
        %1365 = vmatprep.subr.bf16.mxu0 0
        %1366 = vmatpush1.bf16.msra.mxu0 %v1347
        %1367 = vmatprep.subr.bf16.mxu0 0
        %1368 = vmatpush1.bf16.msra.mxu0 %v1348
        %1369 = vmatprep.subr.bf16.mxu0 0
        %1370 = vmatpush1.bf16.msra.mxu0 %v1349
        %1371 = vmatprep.subr.bf16.mxu0 0
        %1372 = vmatpush1.bf16.msra.mxu0 %v1350
        %1373 = vmatprep.subr.bf16.mxu0 0
        %1374 = vmatpush1.bf16.msra.mxu0 %v1351
        %1375 = vmatprep.subr.bf16.mxu0 0
        %1376 = vmatpush1.bf16.msra.mxu0 %v1352
        %1377 = vmatprep.subr.bf16.mxu0 0
        %1378 = vmatpush1.bf16.msra.mxu0 0
        %1379 = vmatprep.subr.bf16.mxu0 0
        %1380 = vmatpush1.bf16.msra.mxu0 0
        %1381 = vmatprep.subr.bf16.mxu0 0
        %1382 = vmatpush1.bf16.msra.mxu0 0
        %1383 = vmatprep.subr.bf16.mxu0 0
        %1384 = vmatpush1.bf16.msra.mxu0 0
        %1385 = vmatprep.subr.bf16.mxu0 0
        %1386 = vmatpush1.bf16.msra.mxu0 0
        %1387 = vmatprep.subr.bf16.mxu0 0
        %1388 = vmatpush1.bf16.msra.mxu0 0
        %1389 = vmatprep.subr.bf16.mxu0 0
        %1390 = vmatpush1.bf16.msra.mxu0 0
        %1391 = vmatprep.subr.bf16.mxu0 0
        %1392 = vmatpush1.bf16.msra.mxu0 0
        %1393 = vmatprep.mubr.bf16.mxu0 0
        %1394 = vmatmul.mubr.bf16.gmra.mrb[0].mxu0 %v1292
        %v1395 = vpop.f32.mrb[0].mxu0
        %v1396 = vadd.f32 0.0, %v1395
        %v1397 = vpop.f32.mrb[0].mxu0
        %v1398 = vpop.f32.mrb[0].mxu0
        %v1399 = vadd.f32 0.0, %v1398
        %v1400 = vpop.f32.mrb[0].mxu0
        %1401 = vmatprep.mubr.bf16.mxu0 0
        %1402 = vmatmul.mubr.bf16.gmra.mrb[0].mxu0 %v1293
        %v1403 = vpop.f32.mrb[0].mxu0
        %v1404 = vadd.f32 0.0, %v1403
        %v1405 = vpop.f32.mrb[0].mxu0
        %v1406 = vpop.f32.mrb[0].mxu0
        %v1407 = vadd.f32 0.0, %v1406
        %v1408 = vpop.f32.mrb[0].mxu0
        %1409 = vmatprep.mubr.bf16.mxu0 0
        %1410 = vmatmul.mubr.bf16.gmra.mrb[0].mxu0 %v1294
        %v1411 = vpop.f32.mrb[0].mxu0
        %v1412 = vadd.f32 0.0, %v1411
        %v1413 = vpop.f32.mrb[0].mxu0
        %v1414 = vpop.f32.mrb[0].mxu0
        %v1415 = vadd.f32 0.0, %v1414
        %v1416 = vpop.f32.mrb[0].mxu0
        %1417 = vmatprep.mubr.bf16.mxu0 0
        %1418 = vmatmul.mubr.bf16.gmra.mrb[0].mxu0 %v1295
        %v1419 = vpop.f32.mrb[0].mxu0
        %v1420 = vadd.f32 0.0, %v1419
        %v1421 = vpop.f32.mrb[0].mxu0
        %v1422 = vpop.f32.mrb[0].mxu0
        %v1423 = vadd.f32 0.0, %v1422
        %v1424 = vpop.f32.mrb[0].mxu0
        %1425 = vdwg.mxu0
        %v1426 = vadd.f32 %v1276, %v1396
        %v1427 = vadd.f32 %v1277, %v1399
        %v1428 = vadd.f32 %v1278, %v1404
        %v1429 = vadd.f32 %v1279, %v1407
        %v1430 = vadd.f32 %v1280, %v1412
        %v1431 = vadd.f32 %v1281, %v1415
        %v1432 = vadd.f32 %v1282, %v1420
        %v1433 = vadd.f32 %v1283, %v1423
        %v1434 = vld [vmem:[#allocation2 + $0x11] sm:$0xff]
        %v1435 = vld [vmem:[#allocation2 + $0x19] sm:$0xff]
        %v1436 = vld [vmem:[#allocation2 + $0x21] sm:$0xff]
        %v1437 = vld [vmem:[#allocation2 + $0x29] sm:$0xff]
        %v1438 = vld [vmem:[#allocation2 + $0x31] sm:$0xff]
        %v1439 = vld [vmem:[#allocation2 + $0x39] sm:$0xff]
        %v1440 = vld [vmem:[#allocation2 + $0x41] sm:$0xff]
        %v1441 = vld [vmem:[#allocation2 + $0x49] sm:$0xff]
        %v1442 = vmul.f32 %v1434, %v939
        %v1443 = vmul.f32 %v1435, %v944
        %v1444 = vmul.f32 %v1436, %v949
        %v1445 = vmul.f32 %v1437, %v954
        %v1446 = vmul.f32 %v1438, %v959
        %v1447 = vmul.f32 %v1439, %v964
        %v1448 = vmul.f32 %v1440, %v969
        %v1449 = vmul.f32 %v1441, %v974
        %v1450 = vpack.c.bf16 %v1443, %v1442
        %v1451 = vpack.c.bf16 %v1445, %v1444
        %v1452 = vpack.c.bf16 %v1447, %v1446
        %v1453 = vpack.c.bf16 %v1449, %v1448
        %s1454 = scalar_lea.vmem [#allocation3], 320
        %v1455 = vld [vmem:[%s1454] sm:$0xf]
        %v1456 = vld [vmem:[%s1454 + $0x4] sm:$0xf]
        %v1457 = vld [vmem:[%s1454 + $0x8] sm:$0xf]
        %v1458 = vld [vmem:[%s1454 + $0xc] sm:$0xf]
        %v1459 = vld [vmem:[%s1454 + $0x10] sm:$0xf]
        %v1460 = vld [vmem:[%s1454 + $0x14] sm:$0xf]
        %v1461 = vld [vmem:[%s1454 + $0x18] sm:$0xf]
        %v1462 = vld [vmem:[%s1454 + $0x1c] sm:$0xf]
        %v1463 = vld [vmem:[%s1454 + $0x20] sm:$0xf]
        %v1464 = vld [vmem:[%s1454 + $0x24] sm:$0xf]
        %v1465 = vld [vmem:[%s1454 + $0x28] sm:$0xf]
        %v1466 = vld [vmem:[%s1454 + $0x2c] sm:$0xf]
        %v1467 = vld [vmem:[%s1454 + $0x30] sm:$0xf]
        %v1468 = vld [vmem:[%s1454 + $0x34] sm:$0xf]
        %v1469 = vld [vmem:[%s1454 + $0x38] sm:$0xf]
        %v1470 = vld [vmem:[%s1454 + $0x3c] sm:$0xf]
        %v1487 = vunpack.c.l.b16 %v1455
        %v1488 = vunpack.c.l.b16 %v1456
        %v1489 = vunpack.c.l.b16 %v1457
        %v1490 = vunpack.c.l.b16 %v1458
        %v1491 = vunpack.c.l.b16 %v1459
        %v1492 = vunpack.c.l.b16 %v1460
        %v1493 = vunpack.c.l.b16 %v1461
        %v1494 = vunpack.c.l.b16 %v1462
        %v1495 = vunpack.c.l.b16 %v1463
        %v1496 = vunpack.c.l.b16 %v1464
        %v1497 = vunpack.c.l.b16 %v1465
        %v1498 = vunpack.c.l.b16 %v1466
        %v1499 = vunpack.c.l.b16 %v1467
        %v1500 = vunpack.c.l.b16 %v1468
        %v1501 = vunpack.c.l.b16 %v1469
        %v1502 = vunpack.c.l.b16 %v1470
        %v1503 = vpack.c.b16 %v1488, %v1487
        %v1504 = vpack.c.b16 %v1490, %v1489
        %v1505 = vpack.c.b16 %v1492, %v1491
        %v1506 = vpack.c.b16 %v1494, %v1493
        %v1507 = vpack.c.b16 %v1496, %v1495
        %v1508 = vpack.c.b16 %v1498, %v1497
        %v1509 = vpack.c.b16 %v1500, %v1499
        %v1510 = vpack.c.b16 %v1502, %v1501
        %1519 = vmatprep.subr.bf16.mxu0 0
        %1520 = vmatpush1.bf16.msra.mxu0 %v1503
        %1521 = vmatprep.subr.bf16.mxu0 0
        %1522 = vmatpush1.bf16.msra.mxu0 %v1504
        %1523 = vmatprep.subr.bf16.mxu0 0
        %1524 = vmatpush1.bf16.msra.mxu0 %v1505
        %1525 = vmatprep.subr.bf16.mxu0 0
        %1526 = vmatpush1.bf16.msra.mxu0 %v1506
        %1527 = vmatprep.subr.bf16.mxu0 0
        %1528 = vmatpush1.bf16.msra.mxu0 %v1507
        %1529 = vmatprep.subr.bf16.mxu0 0
        %1530 = vmatpush1.bf16.msra.mxu0 %v1508
        %1531 = vmatprep.subr.bf16.mxu0 0
        %1532 = vmatpush1.bf16.msra.mxu0 %v1509
        %1533 = vmatprep.subr.bf16.mxu0 0
        %1534 = vmatpush1.bf16.msra.mxu0 %v1510
        %1535 = vmatprep.subr.bf16.mxu0 0
        %1536 = vmatpush1.bf16.msra.mxu0 0
        %1537 = vmatprep.subr.bf16.mxu0 0
        %1538 = vmatpush1.bf16.msra.mxu0 0
        %1539 = vmatprep.subr.bf16.mxu0 0
        %1540 = vmatpush1.bf16.msra.mxu0 0
        %1541 = vmatprep.subr.bf16.mxu0 0
        %1542 = vmatpush1.bf16.msra.mxu0 0
        %1543 = vmatprep.subr.bf16.mxu0 0
        %1544 = vmatpush1.bf16.msra.mxu0 0
        %1545 = vmatprep.subr.bf16.mxu0 0
        %1546 = vmatpush1.bf16.msra.mxu0 0
        %1547 = vmatprep.subr.bf16.mxu0 0
        %1548 = vmatpush1.bf16.msra.mxu0 0
        %1549 = vmatprep.subr.bf16.mxu0 0
        %1550 = vmatpush1.bf16.msra.mxu0 0
        %1551 = vmatprep.mubr.bf16.mxu0 0
        %1552 = vmatmul.mubr.bf16.gmra.mrb[0].mxu0 %v1450
        %v1553 = vpop.f32.mrb[0].mxu0
        %v1554 = vadd.f32 0.0, %v1553
        %v1555 = vpop.f32.mrb[0].mxu0
        %v1556 = vpop.f32.mrb[0].mxu0
        %v1557 = vadd.f32 0.0, %v1556
        %v1558 = vpop.f32.mrb[0].mxu0
        %1559 = vmatprep.mubr.bf16.mxu0 0
        %1560 = vmatmul.mubr.bf16.gmra.mrb[0].mxu0 %v1451
        %v1561 = vpop.f32.mrb[0].mxu0
        %v1562 = vadd.f32 0.0, %v1561
        %v1563 = vpop.f32.mrb[0].mxu0
        %v1564 = vpop.f32.mrb[0].mxu0
        %v1565 = vadd.f32 0.0, %v1564
        %v1566 = vpop.f32.mrb[0].mxu0
        %1567 = vmatprep.mubr.bf16.mxu0 0
        %1568 = vmatmul.mubr.bf16.gmra.mrb[0].mxu0 %v1452
        %v1569 = vpop.f32.mrb[0].mxu0
        %v1570 = vadd.f32 0.0, %v1569
        %v1571 = vpop.f32.mrb[0].mxu0
        %v1572 = vpop.f32.mrb[0].mxu0
        %v1573 = vadd.f32 0.0, %v1572
        %v1574 = vpop.f32.mrb[0].mxu0
        %1575 = vmatprep.mubr.bf16.mxu0 0
        %1576 = vmatmul.mubr.bf16.gmra.mrb[0].mxu0 %v1453
        %v1577 = vpop.f32.mrb[0].mxu0
        %v1578 = vadd.f32 0.0, %v1577
        %v1579 = vpop.f32.mrb[0].mxu0
        %v1580 = vpop.f32.mrb[0].mxu0
        %v1581 = vadd.f32 0.0, %v1580
        %v1582 = vpop.f32.mrb[0].mxu0
        %1583 = vdwg.mxu0
        %v1584 = vadd.f32 %v1426, %v1554
        %v1585 = vadd.f32 %v1427, %v1557
        %v1586 = vadd.f32 %v1428, %v1562
        %v1587 = vadd.f32 %v1429, %v1565
        %v1588 = vadd.f32 %v1430, %v1570
        %v1589 = vadd.f32 %v1431, %v1573
        %v1590 = vadd.f32 %v1432, %v1578
        %v1591 = vadd.f32 %v1433, %v1581
        %v1592 = vld [vmem:[#allocation2 + $0x17] sm:$0xff]
        %v1593 = vld [vmem:[#allocation2 + $0x1f] sm:$0xff]
        %v1594 = vld [vmem:[#allocation2 + $0x27] sm:$0xff]
        %v1595 = vld [vmem:[#allocation2 + $0x2f] sm:$0xff]
        %v1596 = vld [vmem:[#allocation2 + $0x37] sm:$0xff]
        %v1597 = vld [vmem:[#allocation2 + $0x3f] sm:$0xff]
        %v1598 = vld [vmem:[#allocation2 + $0x47] sm:$0xff]
        %v1599 = vld [vmem:[#allocation2 + $0x4f] sm:$0xff]
        %v1600 = vmul.f32 %v1592, %v578
        %v1601 = vmul.f32 %v1593, %v583
        %v1602 = vmul.f32 %v1594, %v588
        %v1603 = vmul.f32 %v1595, %v593
        %v1604 = vmul.f32 %v1596, %v598
        %v1605 = vmul.f32 %v1597, %v603
        %v1606 = vmul.f32 %v1598, %v608
        %v1607 = vmul.f32 %v1599, %v613
        %v1608 = vpack.c.bf16 %v1601, %v1600
        %v1609 = vpack.c.bf16 %v1603, %v1602
        %v1610 = vpack.c.bf16 %v1605, %v1604
        %v1611 = vpack.c.bf16 %v1607, %v1606
        %s1612 = scalar_lea.vmem [#allocation3], 384
        %v1613 = vld [vmem:[%s1612] sm:$0xf]
        %v1614 = vld [vmem:[%s1612 + $0x4] sm:$0xf]
        %v1615 = vld [vmem:[%s1612 + $0x8] sm:$0xf]
        %v1616 = vld [vmem:[%s1612 + $0xc] sm:$0xf]
        %v1617 = vld [vmem:[%s1612 + $0x10] sm:$0xf]
        %v1618 = vld [vmem:[%s1612 + $0x14] sm:$0xf]
        %v1619 = vld [vmem:[%s1612 + $0x18] sm:$0xf]
        %v1620 = vld [vmem:[%s1612 + $0x1c] sm:$0xf]
        %v1621 = vld [vmem:[%s1612 + $0x20] sm:$0xf]
        %v1622 = vld [vmem:[%s1612 + $0x24] sm:$0xf]
        %v1623 = vld [vmem:[%s1612 + $0x28] sm:$0xf]
        %v1624 = vld [vmem:[%s1612 + $0x2c] sm:$0xf]
        %v1625 = vld [vmem:[%s1612 + $0x30] sm:$0xf]
        %v1626 = vld [vmem:[%s1612 + $0x34] sm:$0xf]
        %v1627 = vld [vmem:[%s1612 + $0x38] sm:$0xf]
        %v1628 = vld [vmem:[%s1612 + $0x3c] sm:$0xf]
        %v1645 = vunpack.c.l.b16 %v1613
        %v1646 = vunpack.c.l.b16 %v1614
        %v1647 = vunpack.c.l.b16 %v1615
        %v1648 = vunpack.c.l.b16 %v1616
        %v1649 = vunpack.c.l.b16 %v1617
        %v1650 = vunpack.c.l.b16 %v1618
        %v1651 = vunpack.c.l.b16 %v1619
        %v1652 = vunpack.c.l.b16 %v1620
        %v1653 = vunpack.c.l.b16 %v1621
        %v1654 = vunpack.c.l.b16 %v1622
        %v1655 = vunpack.c.l.b16 %v1623
        %v1656 = vunpack.c.l.b16 %v1624
        %v1657 = vunpack.c.l.b16 %v1625
        %v1658 = vunpack.c.l.b16 %v1626
        %v1659 = vunpack.c.l.b16 %v1627
        %v1660 = vunpack.c.l.b16 %v1628
        %v1661 = vpack.c.b16 %v1646, %v1645
        %v1662 = vpack.c.b16 %v1648, %v1647
        %v1663 = vpack.c.b16 %v1650, %v1649
        %v1664 = vpack.c.b16 %v1652, %v1651
        %v1665 = vpack.c.b16 %v1654, %v1653
        %v1666 = vpack.c.b16 %v1656, %v1655
        %v1667 = vpack.c.b16 %v1658, %v1657
        %v1668 = vpack.c.b16 %v1660, %v1659
        %1677 = vmatprep.subr.bf16.mxu0 0
        %1678 = vmatpush1.bf16.msra.mxu0 %v1661
        %1679 = vmatprep.subr.bf16.mxu0 0
        %1680 = vmatpush1.bf16.msra.mxu0 %v1662
        %1681 = vmatprep.subr.bf16.mxu0 0
        %1682 = vmatpush1.bf16.msra.mxu0 %v1663
        %1683 = vmatprep.subr.bf16.mxu0 0
        %1684 = vmatpush1.bf16.msra.mxu0 %v1664
        %1685 = vmatprep.subr.bf16.mxu0 0
        %1686 = vmatpush1.bf16.msra.mxu0 %v1665
        %1687 = vmatprep.subr.bf16.mxu0 0
        %1688 = vmatpush1.bf16.msra.mxu0 %v1666
        %1689 = vmatprep.subr.bf16.mxu0 0
        %1690 = vmatpush1.bf16.msra.mxu0 %v1667
        %1691 = vmatprep.subr.bf16.mxu0 0
        %1692 = vmatpush1.bf16.msra.mxu0 %v1668
        %1693 = vmatprep.subr.bf16.mxu0 0
        %1694 = vmatpush1.bf16.msra.mxu0 0
        %1695 = vmatprep.subr.bf16.mxu0 0
        %1696 = vmatpush1.bf16.msra.mxu0 0
        %1697 = vmatprep.subr.bf16.mxu0 0
        %1698 = vmatpush1.bf16.msra.mxu0 0
        %1699 = vmatprep.subr.bf16.mxu0 0
        %1700 = vmatpush1.bf16.msra.mxu0 0
        %1701 = vmatprep.subr.bf16.mxu0 0
        %1702 = vmatpush1.bf16.msra.mxu0 0
        %1703 = vmatprep.subr.bf16.mxu0 0
        %1704 = vmatpush1.bf16.msra.mxu0 0
        %1705 = vmatprep.subr.bf16.mxu0 0
        %1706 = vmatpush1.bf16.msra.mxu0 0
        %1707 = vmatprep.subr.bf16.mxu0 0
        %1708 = vmatpush1.bf16.msra.mxu0 0
        %1709 = vmatprep.mubr.bf16.mxu0 0
        %1710 = vmatmul.mubr.bf16.gmra.mrb[0].mxu0 %v1608
        %v1711 = vpop.f32.mrb[0].mxu0
        %v1712 = vadd.f32 0.0, %v1711
        %v1713 = vpop.f32.mrb[0].mxu0
        %v1714 = vpop.f32.mrb[0].mxu0
        %v1715 = vadd.f32 0.0, %v1714
        %v1716 = vpop.f32.mrb[0].mxu0
        %1717 = vmatprep.mubr.bf16.mxu0 0
        %1718 = vmatmul.mubr.bf16.gmra.mrb[0].mxu0 %v1609
        %v1719 = vpop.f32.mrb[0].mxu0
        %v1720 = vadd.f32 0.0, %v1719
        %v1721 = vpop.f32.mrb[0].mxu0
        %v1722 = vpop.f32.mrb[0].mxu0
        %v1723 = vadd.f32 0.0, %v1722
        %v1724 = vpop.f32.mrb[0].mxu0
        %1725 = vmatprep.mubr.bf16.mxu0 0
        %1726 = vmatmul.mubr.bf16.gmra.mrb[0].mxu0 %v1610
        %v1727 = vpop.f32.mrb[0].mxu0
        %v1728 = vadd.f32 0.0, %v1727
        %v1729 = vpop.f32.mrb[0].mxu0
        %v1730 = vpop.f32.mrb[0].mxu0
        %v1731 = vadd.f32 0.0, %v1730
        %v1732 = vpop.f32.mrb[0].mxu0
        %1733 = vmatprep.mubr.bf16.mxu0 0
        %1734 = vmatmul.mubr.bf16.gmra.mrb[0].mxu0 %v1611
        %v1735 = vpop.f32.mrb[0].mxu0
        %v1736 = vadd.f32 0.0, %v1735
        %v1737 = vpop.f32.mrb[0].mxu0
        %v1738 = vpop.f32.mrb[0].mxu0
        %v1739 = vadd.f32 0.0, %v1738
        %v1740 = vpop.f32.mrb[0].mxu0
        %1741 = vdwg.mxu0
        %v1742 = vadd.f32 %v1584, %v1712
        %v1743 = vadd.f32 %v1585, %v1715
        %v1744 = vadd.f32 %v1586, %v1720
        %v1745 = vadd.f32 %v1587, %v1723
        %v1746 = vadd.f32 %v1588, %v1728
        %v1747 = vadd.f32 %v1589, %v1731
        %v1748 = vadd.f32 %v1590, %v1736
        %v1749 = vadd.f32 %v1591, %v1739
        %v1750 = vld [vmem:[#allocation2 + $0x18] sm:$0xff]
        %v1751 = vld [vmem:[#allocation2 + $0x20] sm:$0xff]
        %v1752 = vld [vmem:[#allocation2 + $0x28] sm:$0xff]
        %v1753 = vld [vmem:[#allocation2 + $0x30] sm:$0xff]
        %v1754 = vld [vmem:[#allocation2 + $0x38] sm:$0xff]
        %v1755 = vld [vmem:[#allocation2 + $0x40] sm:$0xff]
        %v1756 = vld [vmem:[#allocation2 + $0x48] sm:$0xff]
        %v1757 = vld [vmem:[#allocation2 + $0x50] sm:$0xff]
        %v1758 = vpack.c.bf16 %v1751, %v1750
        %v1759 = vpack.c.bf16 %v1753, %v1752
        %v1760 = vpack.c.bf16 %v1755, %v1754
        %v1761 = vpack.c.bf16 %v1757, %v1756
        %s1762 = scalar_lea.vmem [#allocation3], 448
        %v1763 = vld [vmem:[%s1762] sm:$0xf]
        %v1764 = vld [vmem:[%s1762 + $0x4] sm:$0xf]
        %v1765 = vld [vmem:[%s1762 + $0x8] sm:$0xf]
        %v1766 = vld [vmem:[%s1762 + $0xc] sm:$0xf]
        %v1767 = vld [vmem:[%s1762 + $0x10] sm:$0xf]
        %v1768 = vld [vmem:[%s1762 + $0x14] sm:$0xf]
        %v1769 = vld [vmem:[%s1762 + $0x18] sm:$0xf]
        %v1770 = vld [vmem:[%s1762 + $0x1c] sm:$0xf]
        %v1771 = vld [vmem:[%s1762 + $0x20] sm:$0xf]
        %v1772 = vld [vmem:[%s1762 + $0x24] sm:$0xf]
        %v1773 = vld [vmem:[%s1762 + $0x28] sm:$0xf]
        %v1774 = vld [vmem:[%s1762 + $0x2c] sm:$0xf]
        %v1775 = vld [vmem:[%s1762 + $0x30] sm:$0xf]
        %v1776 = vld [vmem:[%s1762 + $0x34] sm:$0xf]
        %v1777 = vld [vmem:[%s1762 + $0x38] sm:$0xf]
        %v1778 = vld [vmem:[%s1762 + $0x3c] sm:$0xf]
        %v1795 = vunpack.c.l.b16 %v1763
        %v1796 = vunpack.c.l.b16 %v1764
        %v1797 = vunpack.c.l.b16 %v1765
        %v1798 = vunpack.c.l.b16 %v1766
        %v1799 = vunpack.c.l.b16 %v1767
        %v1800 = vunpack.c.l.b16 %v1768
        %v1801 = vunpack.c.l.b16 %v1769
        %v1802 = vunpack.c.l.b16 %v1770
        %v1803 = vunpack.c.l.b16 %v1771
        %v1804 = vunpack.c.l.b16 %v1772
        %v1805 = vunpack.c.l.b16 %v1773
        %v1806 = vunpack.c.l.b16 %v1774
        %v1807 = vunpack.c.l.b16 %v1775
        %v1808 = vunpack.c.l.b16 %v1776
        %v1809 = vunpack.c.l.b16 %v1777
        %v1810 = vunpack.c.l.b16 %v1778
        %v1811 = vpack.c.b16 %v1796, %v1795
        %v1812 = vpack.c.b16 %v1798, %v1797
        %v1813 = vpack.c.b16 %v1800, %v1799
        %v1814 = vpack.c.b16 %v1802, %v1801
        %v1815 = vpack.c.b16 %v1804, %v1803
        %v1816 = vpack.c.b16 %v1806, %v1805
        %v1817 = vpack.c.b16 %v1808, %v1807
        %v1818 = vpack.c.b16 %v1810, %v1809
        %1827 = vmatprep.subr.bf16.mxu0 0
        %1828 = vmatpush1.bf16.msra.mxu0 %v1811
        %1829 = vmatprep.subr.bf16.mxu0 0
        %1830 = vmatpush1.bf16.msra.mxu0 %v1812
        %1831 = vmatprep.subr.bf16.mxu0 0
        %1832 = vmatpush1.bf16.msra.mxu0 %v1813
        %1833 = vmatprep.subr.bf16.mxu0 0
        %1834 = vmatpush1.bf16.msra.mxu0 %v1814
        %1835 = vmatprep.subr.bf16.mxu0 0
        %1836 = vmatpush1.bf16.msra.mxu0 %v1815
        %1837 = vmatprep.subr.bf16.mxu0 0
        %1838 = vmatpush1.bf16.msra.mxu0 %v1816
        %1839 = vmatprep.subr.bf16.mxu0 0
        %1840 = vmatpush1.bf16.msra.mxu0 %v1817
        %1841 = vmatprep.subr.bf16.mxu0 0
        %1842 = vmatpush1.bf16.msra.mxu0 %v1818
        %1843 = vmatprep.subr.bf16.mxu0 0
        %1844 = vmatpush1.bf16.msra.mxu0 0
        %1845 = vmatprep.subr.bf16.mxu0 0
        %1846 = vmatpush1.bf16.msra.mxu0 0
        %1847 = vmatprep.subr.bf16.mxu0 0
        %1848 = vmatpush1.bf16.msra.mxu0 0
        %1849 = vmatprep.subr.bf16.mxu0 0
        %1850 = vmatpush1.bf16.msra.mxu0 0
        %1851 = vmatprep.subr.bf16.mxu0 0
        %1852 = vmatpush1.bf16.msra.mxu0 0
        %1853 = vmatprep.subr.bf16.mxu0 0
        %1854 = vmatpush1.bf16.msra.mxu0 0
        %1855 = vmatprep.subr.bf16.mxu0 0
        %1856 = vmatpush1.bf16.msra.mxu0 0
        %1857 = vmatprep.subr.bf16.mxu0 0
        %1858 = vmatpush1.bf16.msra.mxu0 0
        %1859 = vmatprep.mubr.bf16.mxu0 0
        %1860 = vmatmul.mubr.bf16.gmra.mrb[0].mxu0 %v1758
        %v1861 = vpop.f32.mrb[0].mxu0
        %v1862 = vadd.f32 0.0, %v1861
        %v1863 = vpop.f32.mrb[0].mxu0
        %v1864 = vpop.f32.mrb[0].mxu0
        %v1865 = vadd.f32 0.0, %v1864
        %v1866 = vpop.f32.mrb[0].mxu0
        %1867 = vmatprep.mubr.bf16.mxu0 0
        %1868 = vmatmul.mubr.bf16.gmra.mrb[0].mxu0 %v1759
        %v1869 = vpop.f32.mrb[0].mxu0
        %v1870 = vadd.f32 0.0, %v1869
        %v1871 = vpop.f32.mrb[0].mxu0
        %v1872 = vpop.f32.mrb[0].mxu0
        %v1873 = vadd.f32 0.0, %v1872
        %v1874 = vpop.f32.mrb[0].mxu0
        %1875 = vmatprep.mubr.bf16.mxu0 0
        %1876 = vmatmul.mubr.bf16.gmra.mrb[0].mxu0 %v1760
        %v1877 = vpop.f32.mrb[0].mxu0
        %v1878 = vadd.f32 0.0, %v1877
        %v1879 = vpop.f32.mrb[0].mxu0
        %v1880 = vpop.f32.mrb[0].mxu0
        %v1881 = vadd.f32 0.0, %v1880
        %v1882 = vpop.f32.mrb[0].mxu0
        %1883 = vmatprep.mubr.bf16.mxu0 0
        %1884 = vmatmul.mubr.bf16.gmra.mrb[0].mxu0 %v1761
        %v1885 = vpop.f32.mrb[0].mxu0
        %v1886 = vadd.f32 0.0, %v1885
        %v1887 = vpop.f32.mrb[0].mxu0
        %v1888 = vpop.f32.mrb[0].mxu0
        %v1889 = vadd.f32 0.0, %v1888
        %v1890 = vpop.f32.mrb[0].mxu0
        %1891 = vdwg.mxu0
        %v1892 = vadd.f32 %v1742, %v1862
        %v1893 = vadd.f32 %v1743, %v1865
        %v1894 = vadd.f32 %v1744, %v1870
        %v1895 = vadd.f32 %v1745, %v1873
        %v1896 = vadd.f32 %v1746, %v1878
        %v1897 = vadd.f32 %v1747, %v1881
        %v1898 = vadd.f32 %v1748, %v1886
        %v1899 = vadd.f32 %v1749, %v1889
        %v1900 = vld [vmem:[#allocation2 + $0x19] sm:$0xff]
        %v1901 = vld [vmem:[#allocation2 + $0x21] sm:$0xff]
        %v1902 = vld [vmem:[#allocation2 + $0x29] sm:$0xff]
        %v1903 = vld [vmem:[#allocation2 + $0x31] sm:$0xff]
        %v1904 = vld [vmem:[#allocation2 + $0x39] sm:$0xff]
        %v1905 = vld [vmem:[#allocation2 + $0x41] sm:$0xff]
        %v1906 = vld [vmem:[#allocation2 + $0x49] sm:$0xff]
        %v1907 = vld [vmem:[#allocation2 + $0x51] sm:$0xff]
        %v1908 = vmul.f32 %v1900, %v939
        %v1909 = vmul.f32 %v1901, %v944
        %v1910 = vmul.f32 %v1902, %v949
        %v1911 = vmul.f32 %v1903, %v954
        %v1912 = vmul.f32 %v1904, %v959
        %v1913 = vmul.f32 %v1905, %v964
        %v1914 = vmul.f32 %v1906, %v969
        %v1915 = vmul.f32 %v1907, %v974
        %v1916 = vpack.c.bf16 %v1909, %v1908
        %v1917 = vpack.c.bf16 %v1911, %v1910
        %v1918 = vpack.c.bf16 %v1913, %v1912
        %v1919 = vpack.c.bf16 %v1915, %v1914
        %s1920 = scalar_lea.vmem [#allocation3], 512
        %v1921 = vld [vmem:[%s1920] sm:$0xf]
        %v1922 = vld [vmem:[%s1920 + $0x4] sm:$0xf]
        %v1923 = vld [vmem:[%s1920 + $0x8] sm:$0xf]
        %v1924 = vld [vmem:[%s1920 + $0xc] sm:$0xf]
        %v1925 = vld [vmem:[%s1920 + $0x10] sm:$0xf]
        %v1926 = vld [vmem:[%s1920 + $0x14] sm:$0xf]
        %v1927 = vld [vmem:[%s1920 + $0x18] sm:$0xf]
        %v1928 = vld [vmem:[%s1920 + $0x1c] sm:$0xf]
        %v1929 = vld [vmem:[%s1920 + $0x20] sm:$0xf]
        %v1930 = vld [vmem:[%s1920 + $0x24] sm:$0xf]
        %v1931 = vld [vmem:[%s1920 + $0x28] sm:$0xf]
        %v1932 = vld [vmem:[%s1920 + $0x2c] sm:$0xf]
        %v1933 = vld [vmem:[%s1920 + $0x30] sm:$0xf]
        %v1934 = vld [vmem:[%s1920 + $0x34] sm:$0xf]
        %v1935 = vld [vmem:[%s1920 + $0x38] sm:$0xf]
        %v1936 = vld [vmem:[%s1920 + $0x3c] sm:$0xf]
        %v1953 = vunpack.c.l.b16 %v1921
        %v1954 = vunpack.c.l.b16 %v1922
        %v1955 = vunpack.c.l.b16 %v1923
        %v1956 = vunpack.c.l.b16 %v1924
        %v1957 = vunpack.c.l.b16 %v1925
        %v1958 = vunpack.c.l.b16 %v1926
        %v1959 = vunpack.c.l.b16 %v1927
        %v1960 = vunpack.c.l.b16 %v1928
        %v1961 = vunpack.c.l.b16 %v1929
        %v1962 = vunpack.c.l.b16 %v1930
        %v1963 = vunpack.c.l.b16 %v1931
        %v1964 = vunpack.c.l.b16 %v1932
        %v1965 = vunpack.c.l.b16 %v1933
        %v1966 = vunpack.c.l.b16 %v1934
        %v1967 = vunpack.c.l.b16 %v1935
        %v1968 = vunpack.c.l.b16 %v1936
        %v1969 = vpack.c.b16 %v1954, %v1953
        %v1970 = vpack.c.b16 %v1956, %v1955
        %v1971 = vpack.c.b16 %v1958, %v1957
        %v1972 = vpack.c.b16 %v1960, %v1959
        %v1973 = vpack.c.b16 %v1962, %v1961
        %v1974 = vpack.c.b16 %v1964, %v1963
        %v1975 = vpack.c.b16 %v1966, %v1965
        %v1976 = vpack.c.b16 %v1968, %v1967
        %1985 = vmatprep.subr.bf16.mxu0 0
        %1986 = vmatpush1.bf16.msra.mxu0 %v1969
        %1987 = vmatprep.subr.bf16.mxu0 0
        %1988 = vmatpush1.bf16.msra.mxu0 %v1970
        %1989 = vmatprep.subr.bf16.mxu0 0
        %1990 = vmatpush1.bf16.msra.mxu0 %v1971
        %1991 = vmatprep.subr.bf16.mxu0 0
        %1992 = vmatpush1.bf16.msra.mxu0 %v1972
        %1993 = vmatprep.subr.bf16.mxu0 0
        %1994 = vmatpush1.bf16.msra.mxu0 %v1973
        %1995 = vmatprep.subr.bf16.mxu0 0
        %1996 = vmatpush1.bf16.msra.mxu0 %v1974
        %1997 = vmatprep.subr.bf16.mxu0 0
        %1998 = vmatpush1.bf16.msra.mxu0 %v1975
        %1999 = vmatprep.subr.bf16.mxu0 0
        %2000 = vmatpush1.bf16.msra.mxu0 %v1976
        %2001 = vmatprep.subr.bf16.mxu0 0
        %2002 = vmatpush1.bf16.msra.mxu0 0
        %2003 = vmatprep.subr.bf16.mxu0 0
        %2004 = vmatpush1.bf16.msra.mxu0 0
        %2005 = vmatprep.subr.bf16.mxu0 0
        %2006 = vmatpush1.bf16.msra.mxu0 0
        %2007 = vmatprep.subr.bf16.mxu0 0
        %2008 = vmatpush1.bf16.msra.mxu0 0
        %2009 = vmatprep.subr.bf16.mxu0 0
        %2010 = vmatpush1.bf16.msra.mxu0 0
        %2011 = vmatprep.subr.bf16.mxu0 0
        %2012 = vmatpush1.bf16.msra.mxu0 0
        %2013 = vmatprep.subr.bf16.mxu0 0
        %2014 = vmatpush1.bf16.msra.mxu0 0
        %2015 = vmatprep.subr.bf16.mxu0 0
        %2016 = vmatpush1.bf16.msra.mxu0 0
        %2017 = vmatprep.mubr.bf16.mxu0 0
        %2018 = vmatmul.mubr.bf16.gmra.mrb[0].mxu0 %v1916
        %v2019 = vpop.f32.mrb[0].mxu0
        %v2020 = vadd.f32 0.0, %v2019
        %v2021 = vpop.f32.mrb[0].mxu0
        %v2022 = vpop.f32.mrb[0].mxu0
        %v2023 = vadd.f32 0.0, %v2022
        %v2024 = vpop.f32.mrb[0].mxu0
        %2025 = vmatprep.mubr.bf16.mxu0 0
        %2026 = vmatmul.mubr.bf16.gmra.mrb[0].mxu0 %v1917
        %v2027 = vpop.f32.mrb[0].mxu0
        %v2028 = vadd.f32 0.0, %v2027
        %v2029 = vpop.f32.mrb[0].mxu0
        %v2030 = vpop.f32.mrb[0].mxu0
        %v2031 = vadd.f32 0.0, %v2030
        %v2032 = vpop.f32.mrb[0].mxu0
        %2033 = vmatprep.mubr.bf16.mxu0 0
        %2034 = vmatmul.mubr.bf16.gmra.mrb[0].mxu0 %v1918
        %v2035 = vpop.f32.mrb[0].mxu0
        %v2036 = vadd.f32 0.0, %v2035
        %v2037 = vpop.f32.mrb[0].mxu0
        %v2038 = vpop.f32.mrb[0].mxu0
        %v2039 = vadd.f32 0.0, %v2038
        %v2040 = vpop.f32.mrb[0].mxu0
        %2041 = vmatprep.mubr.bf16.mxu0 0
        %2042 = vmatmul.mubr.bf16.gmra.mrb[0].mxu0 %v1919
        %v2043 = vpop.f32.mrb[0].mxu0
        %v2044 = vadd.f32 0.0, %v2043
        %v2045 = vpop.f32.mrb[0].mxu0
        %v2046 = vpop.f32.mrb[0].mxu0
        %v2047 = vadd.f32 0.0, %v2046
        %v2048 = vpop.f32.mrb[0].mxu0
        %2049 = vdwg.mxu0
        %v2050 = vadd.f32 %v1892, %v2020
        %v2051 = vadd.f32 %v1893, %v2023
        %v2052 = vadd.f32 %v1894, %v2028
        %v2053 = vadd.f32 %v1895, %v2031
        %v2054 = vadd.f32 %v1896, %v2036
        %v2055 = vadd.f32 %v1897, %v2039
        %v2056 = vadd.f32 %v1898, %v2044
        %v2057 = vadd.f32 %v1899, %v2047
        %v2058 = vmax.f32 %v2050, 0.0
        %v2059 = vmax.f32 %v2051, 0.0
        %v2060 = vmax.f32 %v2052, 0.0
        %v2061 = vmax.f32 %v2053, 0.0
        %v2062 = vmax.f32 %v2054, 0.0
        %v2063 = vmax.f32 %v2055, 0.0
        %v2064 = vmax.f32 %v2056, 0.0
        %v2065 = vmax.f32 %v2057, 0.0
        %v2066 = vpack.c.bf16 %v2059, %v2058
        %v2067 = vpack.c.bf16 %v2061, %v2060
        %v2068 = vpack.c.bf16 %v2063, %v2062
        %v2069 = vpack.c.bf16 %v2065, %v2064
        %v2070 = vld [vmem:[#allocation6] sm:$0xf]
        %v2071 = vld [vmem:[#allocation6 + $0x4] sm:$0xf]
        %v2072 = vld [vmem:[#allocation6 + $0x8] sm:$0xf]
        %v2073 = vld [vmem:[#allocation6 + $0xc] sm:$0xf]
        %v2074 = vld [vmem:[#allocation6 + $0x10] sm:$0xf]
        %v2075 = vld [vmem:[#allocation6 + $0x14] sm:$0xf]
        %v2076 = vld [vmem:[#allocation6 + $0x18] sm:$0xf]
        %v2077 = vld [vmem:[#allocation6 + $0x1c] sm:$0xf]
        %v2078 = vld [vmem:[#allocation6 + $0x20] sm:$0xf]
        %v2079 = vld [vmem:[#allocation6 + $0x24] sm:$0xf]
        %v2080 = vld [vmem:[#allocation6 + $0x28] sm:$0xf]
        %v2081 = vld [vmem:[#allocation6 + $0x2c] sm:$0xf]
        %v2082 = vld [vmem:[#allocation6 + $0x30] sm:$0xf]
        %v2083 = vld [vmem:[#allocation6 + $0x34] sm:$0xf]
        %v2084 = vld [vmem:[#allocation6 + $0x38] sm:$0xf]
        %v2085 = vld [vmem:[#allocation6 + $0x3c] sm:$0xf]
        %v2086 = vld [vmem:[%s6] sm:$0x1]
        %v2088 = vlaneseq
        %v2089 = vshrl.u32 %v2088, 7
        %v2090 = vsub.s32 0, %v2089
        %v2091 = vrot.slane %v2086, %v2090
        %v2109 = vunpack.c.l.b16 %v2070
        %v2110 = vunpack.c.l.b16 %v2071
        %v2111 = vunpack.c.l.b16 %v2072
        %v2112 = vunpack.c.l.b16 %v2073
        %v2113 = vunpack.c.l.b16 %v2074
        %v2114 = vunpack.c.l.b16 %v2075
        %v2115 = vunpack.c.l.b16 %v2076
        %v2116 = vunpack.c.l.b16 %v2077
        %v2117 = vunpack.c.l.b16 %v2078
        %v2118 = vunpack.c.l.b16 %v2079
        %v2119 = vunpack.c.l.b16 %v2080
        %v2120 = vunpack.c.l.b16 %v2081
        %v2121 = vunpack.c.l.b16 %v2082
        %v2122 = vunpack.c.l.b16 %v2083
        %v2123 = vunpack.c.l.b16 %v2084
        %v2124 = vunpack.c.l.b16 %v2085
        %v2125 = vpack.c.b16 %v2110, %v2109
        %v2126 = vpack.c.b16 %v2112, %v2111
        %v2127 = vpack.c.b16 %v2114, %v2113
        %v2128 = vpack.c.b16 %v2116, %v2115
        %v2129 = vpack.c.b16 %v2118, %v2117
        %v2130 = vpack.c.b16 %v2120, %v2119
        %v2131 = vpack.c.b16 %v2122, %v2121
        %v2132 = vpack.c.b16 %v2124, %v2123
        %2141 = vmatprep.subr.bf16.mxu0 0
        %2142 = vmatpush1.bf16.msra.mxu0 %v2125
        %2143 = vmatprep.subr.bf16.mxu0 0
        %2144 = vmatpush1.bf16.msra.mxu0 %v2126
        %2145 = vmatprep.subr.bf16.mxu0 0
        %2146 = vmatpush1.bf16.msra.mxu0 %v2127
        %2147 = vmatprep.subr.bf16.mxu0 0
        %2148 = vmatpush1.bf16.msra.mxu0 %v2128
        %2149 = vmatprep.subr.bf16.mxu0 0
        %2150 = vmatpush1.bf16.msra.mxu0 %v2129
        %2151 = vmatprep.subr.bf16.mxu0 0
        %2152 = vmatpush1.bf16.msra.mxu0 %v2130
        %2153 = vmatprep.subr.bf16.mxu0 0
        %2154 = vmatpush1.bf16.msra.mxu0 %v2131
        %2155 = vmatprep.subr.bf16.mxu0 0
        %2156 = vmatpush1.bf16.msra.mxu0 %v2132
        %2157 = vmatprep.subr.bf16.mxu0 0
        %2158 = vmatpush1.bf16.msra.mxu0 0
        %2159 = vmatprep.subr.bf16.mxu0 0
        %2160 = vmatpush1.bf16.msra.mxu0 0
        %2161 = vmatprep.subr.bf16.mxu0 0
        %2162 = vmatpush1.bf16.msra.mxu0 0
        %2163 = vmatprep.subr.bf16.mxu0 0
        %2164 = vmatpush1.bf16.msra.mxu0 0
        %2165 = vmatprep.subr.bf16.mxu0 0
        %2166 = vmatpush1.bf16.msra.mxu0 0
        %2167 = vmatprep.subr.bf16.mxu0 0
        %2168 = vmatpush1.bf16.msra.mxu0 0
        %2169 = vmatprep.subr.bf16.mxu0 0
        %2170 = vmatpush1.bf16.msra.mxu0 0
        %2171 = vmatprep.subr.bf16.mxu0 0
        %2172 = vmatpush1.bf16.msra.mxu0 0
        %2173 = vmatprep.mubr.bf16.mxu0 0
        %2174 = vmatmul.mubr.bf16.gmra.mrb[0].mxu0 %v2066
        %v2175 = vpop.f32.mrb[0].mxu0
        %v2176 = vadd.f32 %v2091, %v2175
        %v2177 = vpop.f32.mrb[0].mxu0
        %v2178 = vpop.f32.mrb[0].mxu0
        %v2179 = vadd.f32 %v2091, %v2178
        %v2180 = vpop.f32.mrb[0].mxu0
        %2181 = vmatprep.mubr.bf16.mxu0 0
        %2182 = vmatmul.mubr.bf16.gmra.mrb[0].mxu0 %v2067
        %v2183 = vpop.f32.mrb[0].mxu0
        %v2184 = vadd.f32 %v2091, %v2183
        %v2185 = vpop.f32.mrb[0].mxu0
        %v2186 = vpop.f32.mrb[0].mxu0
        %v2187 = vadd.f32 %v2091, %v2186
        %v2188 = vpop.f32.mrb[0].mxu0
        %2189 = vmatprep.mubr.bf16.mxu0 0
        %2190 = vmatmul.mubr.bf16.gmra.mrb[0].mxu0 %v2068
        %v2191 = vpop.f32.mrb[0].mxu0
        %v2192 = vadd.f32 %v2091, %v2191
        %v2193 = vpop.f32.mrb[0].mxu0
        %v2194 = vpop.f32.mrb[0].mxu0
        %v2195 = vadd.f32 %v2091, %v2194
        %v2196 = vpop.f32.mrb[0].mxu0
        %2197 = vmatprep.mubr.bf16.mxu0 0
        %2198 = vmatmul.mubr.bf16.gmra.mrb[0].mxu0 %v2069
        %v2199 = vpop.f32.mrb[0].mxu0
        %v2200 = vadd.f32 %v2091, %v2199
        %v2201 = vpop.f32.mrb[0].mxu0
        %v2202 = vpop.f32.mrb[0].mxu0
        %v2203 = vadd.f32 %v2091, %v2202
        %v2204 = vpop.f32.mrb[0].mxu0
        %2205 = vdwg.mxu0
        %v2206 = vunpack.c.l.bf16 %v362
        %v2207 = vunpack.c.l.bf16 %v363
        %v2208 = vunpack.c.l.bf16 %v364
        %v2209 = vunpack.c.l.bf16 %v365
        %v2210 = vunpack.c.l.bf16 %v366
        %v2211 = vunpack.c.l.bf16 %v367
        %v2212 = vunpack.c.l.bf16 %v368
        %v2213 = vunpack.c.l.bf16 %v369
        %v2214 = vadd.f32 %v2176, %v2206
        %v2215 = vadd.f32 %v2179, %v2207
        %v2216 = vadd.f32 %v2184, %v2208
        %v2217 = vadd.f32 %v2187, %v2209
        %v2218 = vadd.f32 %v2192, %v2210
        %v2219 = vadd.f32 %v2195, %v2211
        %v2220 = vadd.f32 %v2200, %v2212
        %v2221 = vadd.f32 %v2203, %v2213
        %v2222 = vmax.f32 %v2214, 0.0
        %v2223 = vmax.f32 %v2215, 0.0
        %v2224 = vmax.f32 %v2216, 0.0
        %v2225 = vmax.f32 %v2217, 0.0
        %v2226 = vmax.f32 %v2218, 0.0
        %v2227 = vmax.f32 %v2219, 0.0
        %v2228 = vmax.f32 %v2220, 0.0
        %v2229 = vmax.f32 %v2221, 0.0
        %2230 = vst [vmem:[%s355] sm:$0xff] %v2222
        %2231 = vst [vmem:[%s355 + $0x8] sm:$0xff] %v2223
        %2232 = vst [vmem:[%s355 + $0x10] sm:$0xff] %v2224
        %2233 = vst [vmem:[%s355 + $0x18] sm:$0xff] %v2225
        %2234 = vst [vmem:[%s355 + $0x20] sm:$0xff] %v2226
        %2235 = vst [vmem:[%s355 + $0x28] sm:$0xff] %v2227
        %2236 = vst [vmem:[%s355 + $0x30] sm:$0xff] %v2228
        %2237 = vst [vmem:[%s355 + $0x38] sm:$0xff] %v2229
        %s2238 = sand.u32 %s227, 1
        %s2239 = scalar_lea.sflag [#allocation5], %s2238
        %s2240 = sand.u32 %s227, 1
        %s2241 = smul.addr %s2240, 64
        %s2242 = scalar_lea.vmem [#allocation8], %s2241
        // Predicated region
        $region65: #{tpu_custom_call.1} parent=55 // pred_check
          %p2243 = pneg %p237
        $region66: #{tpu_custom_call.1} parent=55 // pred_check_branch
          %2245 = sbr.rel (%p2243) target = $region68
        $region67: #{tpu_custom_call.1} parent=55 // pred_region
          %s2247 = ssub.s32 1024, 1024
          %2248 = vsyncadd %s2239, %s2247
          %s2249 = smul.addr %s25, 8
          %s2250 = smul.addr %s2249, 128
          %s2251 = scalar_lea.hbm %s9, %s2250
          %s2252 = sshll.u32 %s2242, 4
          %s2253 = int_to_ptr.vmem [resolvable:$true] %s2252
          %2258 = dma.vmem_to_hbm [thread:$0]  %s2253, 1024, %s2251, %s2239, 128, 128, 8
        $region68: #{tpu_custom_call.1} parent=55 // pred_fallthru
          _
      $region56: #{tpu_custom_call.1} parent=5 // pred_fallthru
        _
      %p2259 = scmp.le.s32.totalorder 2, %s20
      // Predicated region
      $region69: #{tpu_custom_call.1} parent=5 // pred_check
        %p2260 = pneg %p2259
      $region70: #{tpu_custom_call.1} parent=5 // pred_check_branch
        %2262 = sbr.rel (%p2260) target = $region72
      $region71: #{tpu_custom_call.1} parent=5 // pred_region
        %s2263 = ssub.s32 %s20, 2
        // Predicated region
        $region73: #{tpu_custom_call.1} parent=71 // pred_check
          %p2264 = pneg %p243
        $region74: #{tpu_custom_call.1} parent=71 // pred_check_branch
          %2266 = sbr.rel (%p2264) target = $region76
        $region75: #{tpu_custom_call.1} parent=71 // pred_region
          %s2267 = sand.u32 %s228, 1
          %s2268 = scalar_lea.sflag [#allocation5], %s2267
          %s2269 = sand.u32 %s228, 1
          %s2270 = smul.addr %s2269, 64
          %s2271 = scalar_lea.vmem [#allocation8], %s2270
          %2272 = dma.done %s2268, 1024
        $region76: #{tpu_custom_call.1} parent=71 // pred_fallthru
          _
      $region72: #{tpu_custom_call.1} parent=5 // pred_fallthru
        _
    $region6: #{tpu_custom_call.1} parent=1 // loop_footer
      %s24 = sadd.s32 1, %s20
    $region7: #{tpu_custom_call.1} parent=1 // loop_footer_branch
      %19 = sbr.rel target = $region3
    $region8: #{tpu_custom_call.1} parent=1 // loop_exit
      _
    %2273 = vsyncpa [#allocation4], 1
    %s2274 = scalar_lea.sflag [#allocation4], 1
    %2275 = vsyncpa %s2274, 1
    %2276 = vsyncpa [#allocation7], 1
    %2277 = vsyncpa [#allocation5], 1
    %s2278 = scalar_lea.sflag [#allocation5], 1
    %2279 = vsyncpa %s2278, 1

</llo_original>
